<compile_context>
chip_gen: v7x
topology: tpu7x:2x2x1
jax: 0.10.0
libtpu: 0.0.40
codegen_flags: <defaults>
</compile_context>

<pallas_src>
import functools

import jax
import jax.numpy as jnp
import numpy as np
from jax.experimental import pallas as pl
from jax.experimental.pallas import tpu as pltpu


# ----------------------------------------------------------------------------
# Kernel factory (compute_dtype is a static/trace-time choice)
# ----------------------------------------------------------------------------
def _make_kernel(compute_dtype):
    use_approx_recip = jnp.dtype(compute_dtype) != jnp.dtype(jnp.float32)

    def kernel(xq_ref, xkv_ref, wl_ref, bl_ref, wq_ref, bq_ref,
               wkv_ref, bkv_ref, gamma_ref, o_ref,
               h_sc, q_sc, m_sc, l_sc, acc_sc, k_cache, v_cache):
        # xq_ref  : (1, inc, tq)   z slab for the current query tile
        # xkv_ref : (1, inc, tkv)  z slab for the current key/value tile
        #                          (only meaningful while qi == 0)
        # wl_ref  : (outc, inc)    spectrally-normalized 1x1 conv weight (f32)
        # bl_ref  : (outc, 1)
        # wq_ref  : (K, outc), bq_ref: (K, 1)
        # wkv_ref : (K+V, outc) fused key/value weight, bkv_ref: (K+V, 1)
        # gamma   : (1,) scalar in SMEM
        # o_ref   : (1, outc, tq)
        # scratch : h_sc (outc,tq) f32 residual, q_sc (K,tq), m/l (1,tq) f32,
        #           acc_sc (V,tq) f32, k_cache (nkv,K,tkv), v_cache (nkv,V,tkv)
        qi = pl.program_id(1)
        kv = pl.program_id(2)
        K = wq_ref.shape[0]

        # ---- fill the per-batch K/V cache ONCE (during the qi == 0 kv sweep):
        # conv + LeakyReLU on the kv slab, fused K/V projection, store slab.
        @pl.when(qi == 0)
        def _fill_kv_cache():
            xkv = xkv_ref[0]                                          # (inc, tkv)
            hk = jnp.dot(wl_ref[...], xkv,
                         preferred_element_type=jnp.float32) + bl_ref[...]
            hk = jnp.where(hk > 0, hk, 0.01 * hk)                     # LeakyReLU
            kvp = jnp.dot(wkv_ref[...], hk.astype(compute_dtype),
                          preferred_element_type=jnp.float32) + bkv_ref[...]
            k_cache[kv] = kvp[:K].astype(compute_dtype)               # (K, tkv)
            v_cache[kv] = kvp[K:].astype(compute_dtype)               # (V, tkv)

        # ---- per-q-tile init: conv + LeakyReLU + q projection, reset stats.
        @pl.when(kv == 0)
        def _init_q_tile():
            xq = xq_ref[0]                                            # (inc, tq)
            h = jnp.dot(wl_ref[...], xq,
                        preferred_element_type=jnp.float32) + bl_ref[...]
            h = jnp.where(h > 0, h, 0.01 * h)                         # LeakyReLU
            h_sc[...] = h                                             # f32 residual
            q = jnp.dot(wq_ref[...], h.astype(compute_dtype),
                        preferred_element_type=jnp.float32) + bq_ref[...]
            q_sc[...] = q.astype(compute_dtype)                       # (K, tq)
            m_sc[...] = jnp.full_like(m_sc, -jnp.inf)
            l_sc[...] = jnp.zeros_like(l_sc)
            acc_sc[...] = jnp.zeros_like(acc_sc)

        # ---- per-kv step: read cached K/V, online softmax accumulation.
        k = k_cache[kv]                                               # (K, tkv)
        v = v_cache[kv]                                               # (V, tkv)

        # energy^T[j, i] = <k_j, q_i>; contraction over channels, no k.T (XLU).
        e = jax.lax.dot_general(k, q_sc[...], (((0,), (0,)), ((), ())),
                                preferred_element_type=jnp.float32)   # (tkv, tq)

        # online softmax: stats in f32, reductions over the sublane axis.
        m_prev = m_sc[...]                                            # (1, tq)
        m_new = jnp.maximum(m_prev, jnp.max(e, axis=0, keepdims=True))
        p = jnp.exp(e - m_new)                                        # (tkv, tq)
        alpha = jnp.exp(m_prev - m_new)                               # (1, tq)
        l_sc[...] = alpha * l_sc[...] + jnp.sum(p, axis=0, keepdims=True)
        pv = jax.lax.dot_general(v, p.astype(compute_dtype),
                                 (((1,), (0,)), ((), ())),
                                 preferred_element_type=jnp.float32)  # (V, tq)
        acc_sc[...] = alpha * acc_sc[...] + pv
        m_sc[...] = m_new

        # ---- finalize: normalize, gamma-residual, lane-dense writeback.
        @pl.when(kv == pl.num_programs(2) - 1)
        def _finalize():
            if use_approx_recip:
                inv_l = pl.reciprocal(l_sc[...], approx=True)
            else:
                inv_l = 1.0 / l_sc[...]
            out = gamma_ref[0] * (acc_sc[...] * inv_l) + h_sc[...]    # (outc, tq)
            o_ref[0] = out.astype(o_ref.dtype)

    return kernel


# ----------------------------------------------------------------------------
# VMEM budget (blocks + scratch + e/p temps, with headroom; capped for v7x)
# ----------------------------------------------------------------------------
def _vmem_limit_bytes(inc, outc, K, V, tq, tkv, nkv, compute_dtype, out_dtype):
    f32 = 4
    cd = jnp.dtype(compute_dtype).itemsize
    od = jnp.dtype(out_dtype).itemsize
    pad = lambda n: max(int(n), 16)          # crude sublane-padding allowance
    blocks = (2 * inc * tq * f32 + 2 * inc * tkv * f32    # double-buffered x
              + 2 * pad(outc) * tq * od)                  # double-buffered out
    scratch = (pad(outc) * tq * f32                       # h residual
               + pad(K) * tq * cd                         # q tile
               + 2 * 8 * tq * f32                         # m, l stats
               + pad(V) * tq * f32                        # accumulator
               + nkv * (pad(K) + pad(V)) * tkv * cd)      # K/V caches
    temps = 3 * tq * tkv * f32                            # e, p (+ cast slack)
    weights = 1 << 20                                     # weights/biases/misc
    est = blocks + scratch + temps + weights
    # >= platform default scoped VMEM, 2x headroom, capped at 64 MiB (v7x
    # physical VMEM); v5e/v6e (128 MiB) could raise this for 2048-class tiles.
    return int(min(64 << 20, max(32 << 20, 2 * est)))


# ----------------------------------------------------------------------------
# Wrapper
# ----------------------------------------------------------------------------
@functools.partial(jax.jit,
                   static_argnames=("tq", "tkv", "compute_dtype", "out_dtype"))
def main_block_forward(z, params, *, tq=512, tkv=512,
                       compute_dtype=jnp.bfloat16, out_dtype=jnp.bfloat16):
    """z: (B, inc, L) float32 (PyTorch NCL). Returns (B, outc, L) out_dtype."""
    wl, bl, wq, bq, wkv, bkv, gamma = params
    B, inc, L = z.shape
    outc = wl.shape[0]
    K = wq.shape[0]
    KV = wkv.shape[0]
    V = KV - K
    assert V == outc, "residual `gamma*out + h` requires value_features == outc"

    tq = min(tq, L)
    tkv = min(tkv, L)
    assert L % tq == 0 and L % tkv == 0, "L must be divisible by the tile sizes"
    assert (tq % 128 == 0 or tq == L) and (tkv % 128 == 0 or tkv == L), \
        "tiles must be multiples of 128 (lane-aligned) or the full length"
    nq, nkv = L // tq, L // tkv

    # Weights feeding the projection / attention matmuls are pre-cast once;
    # the conv weight, all biases and the softmax stats stay f32.
    wq_c = wq.astype(compute_dtype)
    wkv_c = wkv.astype(compute_dtype)

    kernel = _make_kernel(compute_dtype)
    full = lambda b, qi, kv: (0, 0)
    vmem_limit = _vmem_limit_bytes(inc, outc, K, V, tq, tkv, nkv,
                                   compute_dtype, out_dtype)

    out = pl.pallas_call(
        kernel,
        out_shape=jax.ShapeDtypeStruct((B, outc, L), out_dtype),
        grid=(B, nq, nkv),
        in_specs=[
            # z, query tile: fetched once per (b, qi).
            pl.BlockSpec((1, inc, tq), lambda b, qi, kv: (b, 0, qi)),
            # z, key/value tile: only needed while filling the per-batch K/V
            # cache (qi == 0); collapses to block 0 afterwards so the kv slabs
            # of z are not re-read from HBM for qi > 0.
            pl.BlockSpec((1, inc, tkv),
                         lambda b, qi, kv: (b, 0, jnp.where(qi == 0, kv, 0))),
            pl.BlockSpec((outc, inc), full),   # wl (spectral-normalized conv)
            pl.BlockSpec((outc, 1), full),     # bl
            pl.BlockSpec((K, outc), full),     # wq
            pl.BlockSpec((K, 1), full),        # bq
            pl.BlockSpec((KV, outc), full),    # fused w_kv
            pl.BlockSpec((KV, 1), full),       # fused b_kv
            pl.BlockSpec(memory_space=pltpu.MemorySpace.SMEM),   # gamma scalar
        ],
        out_specs=pl.BlockSpec((1, outc, tq), lambda b, qi, kv: (b, 0, qi)),
        scratch_shapes=[
            pltpu.VMEM((outc, tq), jnp.float32),        # h (residual, f32)
            pltpu.VMEM((K, tq), compute_dtype),         # q tile
            pltpu.VMEM((1, tq), jnp.float32),           # running max m
            pltpu.VMEM((1, tq), jnp.float32),           # running sum l
            pltpu.VMEM((V, tq), jnp.float32),           # output accumulator
            pltpu.VMEM((nkv, K, tkv), compute_dtype),   # per-batch K cache
            pltpu.VMEM((nkv, V, tkv), compute_dtype),   # per-batch V cache
        ],
        compiler_params=pltpu.CompilerParams(
            # batch is megacore-parallel (v7x); qi must stay serial per core so
            # the K/V cache filled during the qi==0 sweep is valid for qi>0;
            # kv is the online-softmax reduction axis.
            dimension_semantics=("parallel", "arbitrary", "arbitrary"),
            vmem_limit_bytes=vmem_limit),
    )(z, z, wl, bl, wq_c, bq, wkv_c, bkv, gamma)

    return out


# ----------------------------------------------------------------------------
# Deterministic parameter construction (shapes follow the module __init__)
# ----------------------------------------------------------------------------
def make_params(key, inc, outc, value_features, key_features):
    ks = jax.random.split(key, 8)

    def conv_w(k, o, i):  # PyTorch Conv1d weight (o, i, 1) -> used as (o, i)
        return jax.random.normal(k, (o, i), jnp.float32) * 0.2

    def conv_b(k, o):
        return jax.random.normal(k, (o, 1), jnp.float32) * 0.1

    wl = conv_w(ks[0], outc, inc)
    # spectral_norm: divide by largest singular value (exact fixed point of
    # PyTorch's power iteration — see module-level TODO).
    sigma = jnp.linalg.norm(wl, ord=2)
    wl = wl / sigma
    bl = conv_b(ks[1], outc)

    wq = conv_w(ks[2], key_features, outc)
    bq = conv_b(ks[3], key_features)
    wk = conv_w(ks[4], key_features, outc)
    bk = conv_b(ks[5], key_features)
    wv = conv_w(ks[6], value_features, outc)
    bv = conv_b(ks[7], value_features)

    # Fuse key + value projections into one lane-dense matmul.
    wkv = jnp.concatenate([wk, wv], axis=0)     # (K+V, outc)
    bkv = jnp.concatenate([bk, bv], axis=0)     # (K+V, 1)

    # nn.Parameter(torch.zeros(1)) in the module; use a nonzero deterministic
    # value so the attention path actually contributes to the output.
    gamma = jnp.full((1,), 0.5, jnp.float32)

    return (wl, bl, wq, bq, wkv, bkv, gamma)


# ----------------------------------------------------------------------------
# Pure-JAX reference (mirrors the PyTorch forward) for correctness checks
# ----------------------------------------------------------------------------
def reference_forward(z, params):
    wl, bl, wq, bq, wkv, bkv, gamma = params
    K = wq.shape[0]
    wk, wv = wkv[:K], wkv[K:]
    bk, bv = bkv[:K], bkv[K:]

    h = jnp.einsum('oi,bil->bol', wl, z) + bl          # conv1d k=1
    h = jnp.where(h > 0, h, 0.01 * h)                  # LeakyReLU(0.01)
    q = jnp.einsum('ko,bol->bkl', wq, h) + bq
    k = jnp.einsum('ko,bol->bkl', wk, h) + bk
    v = jnp.einsum('vo,bol->bvl', wv, h) + bv
    energy = jnp.einsum('bki,bkj->bij', q, k)          # (B, L, L)
    attn = jax.nn.softmax(energy, axis=-1)
    out = jnp.einsum('bij,bvj->bvi', attn, v)          # (B, V, L)
    return gamma[0] * out + h


if __name__ == "__main__":
    # Small shapes consistent with the module: Conv1d input is (B, inc, L).
    # L = 512 so the default (single 512-wide) tile and the 128-tiled flash
    # path (grid (B, 4, 4), K/V cache reuse at qi > 0) are both exercised.
    B, inc, outc, L = 2, 4, 8, 512
    key_features = 8
    value_features = outc      # residual add requires value_features == outc

    root = jax.random.PRNGKey(0)
    kz, kp = jax.random.split(root)
    z = jax.random.normal(kz, (B, inc, L), jnp.float32)
    params = make_params(kp, inc, outc, value_features, key_features)

    y_ref = reference_forward(z, params)

    # Full-f32 path at 128 tiles: tight correctness check of the tiling,
    # the kv reduction and the per-batch K/V cache (qi > 0 reads the cache).
    y_f32 = jax.block_until_ready(
        main_block_forward(z, params, tq=128, tkv=128,
                           compute_dtype=jnp.float32, out_dtype=jnp.float32))
    np.testing.assert_allclose(np.asarray(y_f32), np.asarray(y_ref),
                               atol=1e-4, rtol=1e-4)

    # Default path: bf16 MXU compute, bf16 writeback, 512-wide tiles.
    y_bf16 = jax.block_until_ready(main_block_forward(z, params))
    np.testing.assert_allclose(np.asarray(y_bf16, dtype=np.float32),
                               np.asarray(y_ref), atol=5e-2, rtol=5e-2)

    print("KERNEL_OK")
</pallas_src>

<mosaic_0001>
module attributes {stable_mosaic.version = 11 : i64} {
  func.func @kernel(%arg0: i32, %arg1: i32, %arg2: i32, %arg3: memref<1x4x128xf32, #tpu.memory_space<vmem>>, %arg4: memref<1x4x128xf32, #tpu.memory_space<vmem>>, %arg5: memref<8x4xf32, #tpu.memory_space<vmem>>, %arg6: memref<8x1xf32, #tpu.memory_space<vmem>>, %arg7: memref<8x8xf32, #tpu.memory_space<vmem>>, %arg8: memref<8x1xf32, #tpu.memory_space<vmem>>, %arg9: memref<16x8xf32, #tpu.memory_space<vmem>>, %arg10: memref<16x1xf32, #tpu.memory_space<vmem>>, %arg11: memref<1xf32, #tpu.memory_space<smem>>, %arg12: memref<1x8x128xf32, #tpu.memory_space<vmem>>, %arg13: memref<8x128xf32, #tpu.memory_space<vmem>>, %arg14: memref<8x128xf32, #tpu.memory_space<vmem>>, %arg15: memref<1x128xf32, #tpu.memory_space<vmem>>, %arg16: memref<1x128xf32, #tpu.memory_space<vmem>>, %arg17: memref<8x128xf32, #tpu.memory_space<vmem>>, %arg18: memref<4x8x128xf32, #tpu.memory_space<vmem>>, %arg19: memref<4x8x128xf32, #tpu.memory_space<vmem>>) attributes {dimension_semantics = [#tpu.dimension_semantics<parallel>, #tpu.dimension_semantics<arbitrary>, #tpu.dimension_semantics<arbitrary>], iteration_bounds = array<i64: 2, 4, 4>, scalar_prefetch = 0 : i64, scratch_operands = 7 : i64, tpu.core_type = #tpu.core_type<tc>, window_params = [{transform_indices = @transform_0, window_bounds = array<i64: 1, 4, 128>}, {transform_indices = @transform_1, window_bounds = array<i64: 1, 4, 128>}, {pipeline_mode = #tpu.pipeline_mode<synchronous>, transform_indices = @transform_2, window_bounds = array<i64: 8, 4>}, {pipeline_mode = #tpu.pipeline_mode<synchronous>, transform_indices = @transform_3, window_bounds = array<i64: 8, 1>}, {pipeline_mode = #tpu.pipeline_mode<synchronous>, transform_indices = @transform_4, window_bounds = array<i64: 8, 8>}, {pipeline_mode = #tpu.pipeline_mode<synchronous>, transform_indices = @transform_5, window_bounds = array<i64: 8, 1>}, {pipeline_mode = #tpu.pipeline_mode<synchronous>, transform_indices = @transform_6, window_bounds = array<i64: 16, 8>}, {pipeline_mode = #tpu.pipeline_mode<synchronous>, transform_indices = @transform_7, window_bounds = array<i64: 16, 1>}, {transform_indices = @transform_8, window_bounds = array<i64: 1>}, {transform_indices = @transform_9, window_bounds = array<i64: 1, 8, 128>}]} {
    %c0_i32 = arith.constant 0 : i32
    %0 = arith.cmpi eq, %arg1, %c0_i32 : i32
    %1 = arith.extui %0 : i1 to i32
    %c0_i32_0 = arith.constant 0 : i32
    %2 = arith.cmpi ne, %1, %c0_i32_0 : i32
    scf.if %2 {
      %c0_24 = arith.constant 0 : index
      %c0_25 = arith.constant 0 : index
      %c0_26 = arith.constant 0 : index
      %39 = vector.load %arg4[%c0_24, %c0_25, %c0_26] : memref<1x4x128xf32, #tpu.memory_space<vmem>>, vector<1x4x128xf32>
      %40 = vector.shape_cast %39 : vector<1x4x128xf32> to vector<4x128xf32>
      %c0_27 = arith.constant 0 : index
      %c0_28 = arith.constant 0 : index
      %41 = vector.load %arg5[%c0_27, %c0_28] : memref<8x4xf32, #tpu.memory_space<vmem>>, vector<8x4xf32>
      %cst_29 = arith.constant dense<0.000000e+00> : vector<8x128xf32>
      %42 = tpu.matmul %41, %40, %cst_29 {dimension_numbers = #tpu.dot_dimension_numbers<[1], [0], [0], [1], [0, 0, 1, 1], [], []>} : vector<8x4xf32>, vector<4x128xf32>, vector<8x128xf32> -> vector<8x128xf32>
      %c0_30 = arith.constant 0 : index
      %c0_31 = arith.constant 0 : index
      %43 = vector.load %arg6[%c0_30, %c0_31] : memref<8x1xf32, #tpu.memory_space<vmem>>, vector<8x1xf32>
      %44 = vector.broadcast %43 : vector<8x1xf32> to vector<8x128xf32>
      %45 = arith.addf %42, %44 : vector<8x128xf32>
      %cst_32 = arith.constant 0.000000e+00 : f32
      %46 = vector.broadcast %cst_32 : f32 to vector<8x128xf32>
      %47 = arith.cmpf ogt, %45, %46 : vector<8x128xf32>
      %cst_33 = arith.constant 0.00999999977 : f32
      %48 = vector.broadcast %cst_33 : f32 to vector<8x128xf32>
      %49 = arith.mulf %48, %45 : vector<8x128xf32>
      %50 = arith.select %47, %45, %49 : vector<8x128xi1>, vector<8x128xf32>
      %c0_34 = arith.constant 0 : index
      %c0_35 = arith.constant 0 : index
      %51 = vector.load %arg9[%c0_34, %c0_35] : memref<16x8xf32, #tpu.memory_space<vmem>>, vector<16x8xf32>
      %cst_36 = arith.constant dense<0.000000e+00> : vector<16x128xf32>
      %52 = tpu.matmul %51, %50, %cst_36 {dimension_numbers = #tpu.dot_dimension_numbers<[1], [0], [0], [1], [0, 0, 1, 1], [], []>} : vector<16x8xf32>, vector<8x128xf32>, vector<16x128xf32> -> vector<16x128xf32>
      %c0_37 = arith.constant 0 : index
      %c0_38 = arith.constant 0 : index
      %53 = vector.load %arg10[%c0_37, %c0_38] : memref<16x1xf32, #tpu.memory_space<vmem>>, vector<16x1xf32>
      %54 = vector.broadcast %53 : vector<16x1xf32> to vector<16x128xf32>
      %55 = arith.addf %52, %54 : vector<16x128xf32>
      %56 = vector.extract_strided_slice %55 {offsets = [0, 0], sizes = [8, 128], strides = [1, 1]} : vector<16x128xf32> to vector<8x128xf32>
      %57 = arith.index_cast %arg2 : i32 to index
      %c0_39 = arith.constant 0 : index
      %c0_40 = arith.constant 0 : index
      %58 = vector.load %arg18[%57, %c0_39, %c0_40] : memref<4x8x128xf32, #tpu.memory_space<vmem>>, vector<1x8x128xf32>
      %59 = vector.shape_cast %58 : vector<1x8x128xf32> to vector<8x128xf32>
      %60 = vector.shape_cast %56 : vector<8x128xf32> to vector<1x8x128xf32>
      tpu.vector_store %arg18[%57, %c0_39, %c0_40], %60 {strides = array<i32>} : memref<4x8x128xf32, #tpu.memory_space<vmem>>, vector<1x8x128xf32>,
      %61 = vector.extract_strided_slice %55 {offsets = [8, 0], sizes = [8, 128], strides = [1, 1]} : vector<16x128xf32> to vector<8x128xf32>
      %62 = arith.index_cast %arg2 : i32 to index
      %c0_41 = arith.constant 0 : index
      %c0_42 = arith.constant 0 : index
      %63 = vector.load %arg19[%62, %c0_41, %c0_42] : memref<4x8x128xf32, #tpu.memory_space<vmem>>, vector<1x8x128xf32>
      %64 = vector.shape_cast %63 : vector<1x8x128xf32> to vector<8x128xf32>
      %65 = vector.shape_cast %61 : vector<8x128xf32> to vector<1x8x128xf32>
      tpu.vector_store %arg19[%62, %c0_41, %c0_42], %65 {strides = array<i32>} : memref<4x8x128xf32, #tpu.memory_space<vmem>>, vector<1x8x128xf32>,
    } else {
    }
    %c0_i32_1 = arith.constant 0 : i32
    %3 = arith.cmpi eq, %arg2, %c0_i32_1 : i32
    %4 = arith.extui %3 : i1 to i32
    %c0_i32_2 = arith.constant 0 : i32
    %5 = arith.cmpi ne, %4, %c0_i32_2 : i32
    scf.if %5 {
      %c0_24 = arith.constant 0 : index
      %c0_25 = arith.constant 0 : index
      %c0_26 = arith.constant 0 : index
      %39 = vector.load %arg3[%c0_24, %c0_25, %c0_26] : memref<1x4x128xf32, #tpu.memory_space<vmem>>, vector<1x4x128xf32>
      %40 = vector.shape_cast %39 : vector<1x4x128xf32> to vector<4x128xf32>
      %c0_27 = arith.constant 0 : index
      %c0_28 = arith.constant 0 : index
      %41 = vector.load %arg5[%c0_27, %c0_28] : memref<8x4xf32, #tpu.memory_space<vmem>>, vector<8x4xf32>
      %cst_29 = arith.constant dense<0.000000e+00> : vector<8x128xf32>
      %42 = tpu.matmul %41, %40, %cst_29 {dimension_numbers = #tpu.dot_dimension_numbers<[1], [0], [0], [1], [0, 0, 1, 1], [], []>} : vector<8x4xf32>, vector<4x128xf32>, vector<8x128xf32> -> vector<8x128xf32>
      %c0_30 = arith.constant 0 : index
      %c0_31 = arith.constant 0 : index
      %43 = vector.load %arg6[%c0_30, %c0_31] : memref<8x1xf32, #tpu.memory_space<vmem>>, vector<8x1xf32>
      %44 = vector.broadcast %43 : vector<8x1xf32> to vector<8x128xf32>
      %45 = arith.addf %42, %44 : vector<8x128xf32>
      %cst_32 = arith.constant 0.000000e+00 : f32
      %46 = vector.broadcast %cst_32 : f32 to vector<8x128xf32>
      %47 = arith.cmpf ogt, %45, %46 : vector<8x128xf32>
      %cst_33 = arith.constant 0.00999999977 : f32
      %48 = vector.broadcast %cst_33 : f32 to vector<8x128xf32>
      %49 = arith.mulf %48, %45 : vector<8x128xf32>
      %50 = arith.select %47, %45, %49 : vector<8x128xi1>, vector<8x128xf32>
      %c0_34 = arith.constant 0 : index
      %c0_35 = arith.constant 0 : index
      %51 = vector.load %arg13[%c0_34, %c0_35] : memref<8x128xf32, #tpu.memory_space<vmem>>, vector<8x128xf32>
      tpu.vector_store %arg13[%c0_34, %c0_35], %50 {strides = array<i32>} : memref<8x128xf32, #tpu.memory_space<vmem>>, vector<8x128xf32>,
      %c0_36 = arith.constant 0 : index
      %c0_37 = arith.constant 0 : index
      %52 = vector.load %arg7[%c0_36, %c0_37] : memref<8x8xf32, #tpu.memory_space<vmem>>, vector<8x8xf32>
      %cst_38 = arith.constant dense<0.000000e+00> : vector<8x128xf32>
      %53 = tpu.matmul %52, %50, %cst_38 {dimension_numbers = #tpu.dot_dimension_numbers<[1], [0], [0], [1], [0, 0, 1, 1], [], []>} : vector<8x8xf32>, vector<8x128xf32>, vector<8x128xf32> -> vector<8x128xf32>
      %c0_39 = arith.constant 0 : index
      %c0_40 = arith.constant 0 : index
      %54 = vector.load %arg8[%c0_39, %c0_40] : memref<8x1xf32, #tpu.memory_space<vmem>>, vector<8x1xf32>
      %55 = vector.broadcast %54 : vector<8x1xf32> to vector<8x128xf32>
      %56 = arith.addf %53, %55 : vector<8x128xf32>
      %c0_41 = arith.constant 0 : index
      %c0_42 = arith.constant 0 : index
      %57 = vector.load %arg14[%c0_41, %c0_42] : memref<8x128xf32, #tpu.memory_space<vmem>>, vector<8x128xf32>
      tpu.vector_store %arg14[%c0_41, %c0_42], %56 {strides = array<i32>} : memref<8x128xf32, #tpu.memory_space<vmem>>, vector<8x128xf32>,
      %cst_43 = arith.constant 0xFF800000 : f32
      %58 = vector.broadcast %cst_43 : f32 to vector<1x128xf32>
      %c0_44 = arith.constant 0 : index
      %c0_45 = arith.constant 0 : index
      %59 = vector.load %arg15[%c0_44, %c0_45] : memref<1x128xf32, #tpu.memory_space<vmem>>, vector<1x128xf32>
      tpu.vector_store %arg15[%c0_44, %c0_45], %58 {strides = array<i32>} : memref<1x128xf32, #tpu.memory_space<vmem>>, vector<1x128xf32>,
      %cst_46 = arith.constant 0.000000e+00 : f32
      %60 = vector.broadcast %cst_46 : f32 to vector<1x128xf32>
      %c0_47 = arith.constant 0 : index
      %c0_48 = arith.constant 0 : index
      %61 = vector.load %arg16[%c0_47, %c0_48] : memref<1x128xf32, #tpu.memory_space<vmem>>, vector<1x128xf32>
      tpu.vector_store %arg16[%c0_47, %c0_48], %60 {strides = array<i32>} : memref<1x128xf32, #tpu.memory_space<vmem>>, vector<1x128xf32>,
      %cst_49 = arith.constant 0.000000e+00 : f32
      %62 = vector.broadcast %cst_49 : f32 to vector<8x128xf32>
      %c0_50 = arith.constant 0 : index
      %c0_51 = arith.constant 0 : index
      %63 = vector.load %arg17[%c0_50, %c0_51] : memref<8x128xf32, #tpu.memory_space<vmem>>, vector<8x128xf32>
      tpu.vector_store %arg17[%c0_50, %c0_51], %62 {strides = array<i32>} : memref<8x128xf32, #tpu.memory_space<vmem>>, vector<8x128xf32>,
    } else {
    }
    %6 = arith.index_cast %arg2 : i32 to index
    %c0 = arith.constant 0 : index
    %c0_3 = arith.constant 0 : index
    %7 = vector.load %arg18[%6, %c0, %c0_3] : memref<4x8x128xf32, #tpu.memory_space<vmem>>, vector<1x8x128xf32>
    %8 = vector.shape_cast %7 : vector<1x8x128xf32> to vector<8x128xf32>
    %9 = arith.index_cast %arg2 : i32 to index
    %c0_4 = arith.constant 0 : index
    %c0_5 = arith.constant 0 : index
    %10 = vector.load %arg19[%9, %c0_4, %c0_5] : memref<4x8x128xf32, #tpu.memory_space<vmem>>, vector<1x8x128xf32>
    %11 = vector.shape_cast %10 : vector<1x8x128xf32> to vector<8x128xf32>
    %c0_6 = arith.constant 0 : index
    %c0_7 = arith.constant 0 : index
    %12 = vector.load %arg14[%c0_6, %c0_7] : memref<8x128xf32, #tpu.memory_space<vmem>>, vector<8x128xf32>
    %cst = arith.constant dense<0.000000e+00> : vector<128x128xf32>
    %13 = tpu.matmul %8, %12, %cst {dimension_numbers = #tpu.dot_dimension_numbers<[0], [0], [1], [1], [0, 1, 1, 1], [], []>} : vector<8x128xf32>, vector<8x128xf32>, vector<128x128xf32> -> vector<128x128xf32>
    %c0_8 = arith.constant 0 : index
    %c0_9 = arith.constant 0 : index
    %14 = vector.load %arg15[%c0_8, %c0_9] : memref<1x128xf32, #tpu.memory_space<vmem>>, vector<1x128xf32>
    %cst_10 = arith.constant dense<0xFF800000> : vector<128xf32>
    %15 = vector.multi_reduction <maximumf>, %13, %cst_10 [0] : vector<128x128xf32> to vector<128xf32>
    %16 = vector.shape_cast %15 : vector<128xf32> to vector<1x128xf32>
    %17 = arith.maximumf %14, %16 : vector<1x128xf32>
    %18 = vector.broadcast %17 : vector<1x128xf32> to vector<128x128xf32>
    %19 = arith.subf %13, %18 : vector<128x128xf32>
    %20 = math.exp %19 : vector<128x128xf32>
    %21 = arith.subf %14, %17 : vector<1x128xf32>
    %22 = math.exp %21 : vector<1x128xf32>
    %c0_11 = arith.constant 0 : index
    %c0_12 = arith.constant 0 : index
    %23 = vector.load %arg16[%c0_11, %c0_12] : memref<1x128xf32, #tpu.memory_space<vmem>>, vector<1x128xf32>
    %24 = arith.mulf %22, %23 : vector<1x128xf32>
    %cst_13 = arith.constant dense<0.000000e+00> : vector<128xf32>
    %25 = vector.multi_reduction <add>, %20, %cst_13 [0] : vector<128x128xf32> to vector<128xf32>
    %26 = vector.shape_cast %25 : vector<128xf32> to vector<1x128xf32>
    %27 = arith.addf %24, %26 : vector<1x128xf32>
    %c0_14 = arith.constant 0 : index
    %c0_15 = arith.constant 0 : index
    %28 = vector.load %arg16[%c0_14, %c0_15] : memref<1x128xf32, #tpu.memory_space<vmem>>, vector<1x128xf32>
    tpu.vector_store %arg16[%c0_14, %c0_15], %27 {strides = array<i32>} : memref<1x128xf32, #tpu.memory_space<vmem>>, vector<1x128xf32>,
    %cst_16 = arith.constant dense<0.000000e+00> : vector<8x128xf32>
    %29 = tpu.matmul %11, %20, %cst_16 {dimension_numbers = #tpu.dot_dimension_numbers<[1], [0], [0], [1], [0, 0, 1, 1], [], []>} : vector<8x128xf32>, vector<128x128xf32>, vector<8x128xf32> -> vector<8x128xf32>
    %c0_17 = arith.constant 0 : index
    %c0_18 = arith.constant 0 : index
    %30 = vector.load %arg17[%c0_17, %c0_18] : memref<8x128xf32, #tpu.memory_space<vmem>>, vector<8x128xf32>
    %31 = vector.broadcast %22 : vector<1x128xf32> to vector<8x128xf32>
    %32 = arith.mulf %31, %30 : vector<8x128xf32>
    %33 = arith.addf %32, %29 : vector<8x128xf32>
    %c0_19 = arith.constant 0 : index
    %c0_20 = arith.constant 0 : index
    %34 = vector.load %arg17[%c0_19, %c0_20] : memref<8x128xf32, #tpu.memory_space<vmem>>, vector<8x128xf32>
    tpu.vector_store %arg17[%c0_19, %c0_20], %33 {strides = array<i32>} : memref<8x128xf32, #tpu.memory_space<vmem>>, vector<8x128xf32>,
    %c0_21 = arith.constant 0 : index
    %c0_22 = arith.constant 0 : index
    %35 = vector.load %arg15[%c0_21, %c0_22] : memref<1x128xf32, #tpu.memory_space<vmem>>, vector<1x128xf32>
    tpu.vector_store %arg15[%c0_21, %c0_22], %17 {strides = array<i32>} : memref<1x128xf32, #tpu.memory_space<vmem>>, vector<1x128xf32>,
    %c3_i32 = arith.constant 3 : i32
    %36 = arith.cmpi eq, %arg2, %c3_i32 : i32
    %37 = arith.extui %36 : i1 to i32
    %c0_i32_23 = arith.constant 0 : i32
    %38 = arith.cmpi ne, %37, %c0_i32_23 : i32
    scf.if %38 {
      %c0_24 = arith.constant 0 : index
      %c0_25 = arith.constant 0 : index
      %39 = vector.load %arg16[%c0_24, %c0_25] : memref<1x128xf32, #tpu.memory_space<vmem>>, vector<1x128xf32>
      %cst_26 = arith.constant 1.000000e+00 : f32
      %40 = vector.broadcast %cst_26 : f32 to vector<1x128xf32>
      %41 = arith.divf %40, %39 : vector<1x128xf32>
      %c0_27 = arith.constant 0 : index
      %42 = memref.load %arg11[%c0_27] : memref<1xf32, #tpu.memory_space<smem>>
      %c0_28 = arith.constant 0 : index
      %c0_29 = arith.constant 0 : index
      %43 = vector.load %arg17[%c0_28, %c0_29] : memref<8x128xf32, #tpu.memory_space<vmem>>, vector<8x128xf32>
      %44 = vector.broadcast %41 : vector<1x128xf32> to vector<8x128xf32>
      %45 = arith.mulf %43, %44 : vector<8x128xf32>
      %46 = vector.broadcast %42 : f32 to vector<8x128xf32>
      %47 = arith.mulf %46, %45 : vector<8x128xf32>
      %c0_30 = arith.constant 0 : index
      %c0_31 = arith.constant 0 : index
      %48 = vector.load %arg13[%c0_30, %c0_31] : memref<8x128xf32, #tpu.memory_space<vmem>>, vector<8x128xf32>
      %49 = arith.addf %47, %48 : vector<8x128xf32>
      %c0_32 = arith.constant 0 : index
      %c0_33 = arith.constant 0 : index
      %c0_34 = arith.constant 0 : index
      %50 = vector.load %arg12[%c0_32, %c0_33, %c0_34] : memref<1x8x128xf32, #tpu.memory_space<vmem>>, vector<1x8x128xf32>
      %51 = vector.shape_cast %50 : vector<1x8x128xf32> to vector<8x128xf32>
      %52 = vector.shape_cast %49 : vector<8x128xf32> to vector<1x8x128xf32>
      tpu.vector_store %arg12[%c0_32, %c0_33, %c0_34], %52 {strides = array<i32>} : memref<1x8x128xf32, #tpu.memory_space<vmem>>, vector<1x8x128xf32>,
    } else {
    }
    return
  }
  func.func @transform_0(%arg0: i32, %arg1: i32, %arg2: i32) -> (i32, i32, i32) {
    %c0_i32 = arith.constant 0 : i32
    %c0_i32_0 = arith.constant 0 : i32
    return %arg0, %c0_i32, %arg1 : i32, i32, i32
  }
  func.func @transform_1(%arg0: i32, %arg1: i32, %arg2: i32) -> (i32, i32, i32) {
    %c0_i32 = arith.constant 0 : i32
    %0 = arith.cmpi eq, %arg1, %c0_i32 : i32
    %c0_i32_0 = arith.constant 0 : i32
    %1 = arith.select %0, %arg2, %c0_i32_0 : i32
    %c0_i32_1 = arith.constant 0 : i32
    %c0_i32_2 = arith.constant 0 : i32
    return %arg0, %c0_i32_1, %1 : i32, i32, i32
  }
  func.func @transform_2(%arg0: i32, %arg1: i32, %arg2: i32) -> (i32, i32) {
    %c0_i32 = arith.constant 0 : i32
    %c0_i32_0 = arith.constant 0 : i32
    %c0_i32_1 = arith.constant 0 : i32
    return %c0_i32, %c0_i32_0 : i32, i32
  }
  func.func @transform_3(%arg0: i32, %arg1: i32, %arg2: i32) -> (i32, i32) {
    %c0_i32 = arith.constant 0 : i32
    %c0_i32_0 = arith.constant 0 : i32
    %c0_i32_1 = arith.constant 0 : i32
    return %c0_i32, %c0_i32_0 : i32, i32
  }
  func.func @transform_4(%arg0: i32, %arg1: i32, %arg2: i32) -> (i32, i32) {
    %c0_i32 = arith.constant 0 : i32
    %c0_i32_0 = arith.constant 0 : i32
    %c0_i32_1 = arith.constant 0 : i32
    return %c0_i32, %c0_i32_0 : i32, i32
  }
  func.func @transform_5(%arg0: i32, %arg1: i32, %arg2: i32) -> (i32, i32) {
    %c0_i32 = arith.constant 0 : i32
    %c0_i32_0 = arith.constant 0 : i32
    %c0_i32_1 = arith.constant 0 : i32
    return %c0_i32, %c0_i32_0 : i32, i32
  }
  func.func @transform_6(%arg0: i32, %arg1: i32, %arg2: i32) -> (i32, i32) {
    %c0_i32 = arith.constant 0 : i32
    %c0_i32_0 = arith.constant 0 : i32
    %c0_i32_1 = arith.constant 0 : i32
    return %c0_i32, %c0_i32_0 : i32, i32
  }
  func.func @transform_7(%arg0: i32, %arg1: i32, %arg2: i32) -> (i32, i32) {
    %c0_i32 = arith.constant 0 : i32
    %c0_i32_0 = arith.constant 0 : i32
    %c0_i32_1 = arith.constant 0 : i32
    return %c0_i32, %c0_i32_0 : i32, i32
  }
  func.func @transform_8(%arg0: i32, %arg1: i32, %arg2: i32) -> i32 {
    %c0_i32 = arith.constant 0 : i32
    %c0_i32_0 = arith.constant 0 : i32
    return %c0_i32 : i32
  }
  func.func @transform_9(%arg0: i32, %arg1: i32, %arg2: i32) -> (i32, i32, i32) {
    %c0_i32 = arith.constant 0 : i32
    %c0_i32_0 = arith.constant 0 : i32
    return %arg0, %c0_i32, %arg1 : i32, i32, i32
  }
}

</mosaic_0001>

<llo_original>
// kernel: main_block_forward.1
$region0: #{main_block_forward.1}
  #allocation0 [shape = 'u32[]', space=smem, size = 0x4, offset = 0x4, fixed_abs, tag = 'smem constant byte address 0x4 - core index']
  #allocation1 [shape = 'u32[144,128]{1,0:T(1,128)}', space=vmem, size = 0x12000, scoped, tag = 'internal scratch']
  #allocation2 [shape = 'f32[8,128]{1,0:T(8,128)}', space=vmem, size = 0x1000, scoped, tag = 'scratch operand']
  #allocation3 [shape = 'f32[8,128]{1,0:T(8,128)}', space=vmem, size = 0x1000, scoped, tag = 'scratch operand']
  #allocation4 [shape = 'f32[1,128]{1,0:T(1,128)}', space=vmem, size = 0x200, scoped, tag = 'scratch operand']
  #allocation5 [shape = 'f32[1,128]{1,0:T(1,128)}', space=vmem, size = 0x200, scoped, tag = 'scratch operand']
  #allocation6 [shape = 'f32[8,128]{1,0:T(8,128)}', space=vmem, size = 0x1000, scoped, tag = 'scratch operand']
  #allocation7 [shape = 'f32[4,8,128]{2,1,0:T(8,128)}', space=vmem, size = 0x4000, scoped, tag = 'scratch operand']
  #allocation8 [shape = 'f32[4,8,128]{2,1,0:T(8,128)}', space=vmem, size = 0x4000, scoped, tag = 'scratch operand']
  #allocation9 [shape = 'f32[1]{0:T(128)S(6)}', space=smem, size = 0x200, scoped, tag = 'scoped memory for main_block_forward.1']
  %s0 = inlined_call_operand.vmem [shape: f32[2,4,512], index: 0, kind: input, shape index: {}, may-alias: {0,1}]
  %s1 = inlined_call_operand.vmem [shape: f32[2,4,512], index: 1, kind: input, shape index: {}, may-alias: {0,1}]
  %s2 = inlined_call_operand.vmem [shape: f32[8,4], index: 2, kind: input, shape index: {}]
  %s3 = inlined_call_operand.vmem [shape: f32[8,1], index: 3, kind: input, shape index: {}]
  %s4 = inlined_call_operand.vmem [shape: f32[8,8], index: 4, kind: input, shape index: {}]
  %s5 = inlined_call_operand.vmem [shape: f32[8,1], index: 5, kind: input, shape index: {}]
  %s6 = inlined_call_operand.vmem [shape: f32[16,8], index: 6, kind: input, shape index: {}]
  %s7 = inlined_call_operand.vmem [shape: f32[16,1], index: 7, kind: input, shape index: {}]
  %s8 = inlined_call_operand.<no memory space> [shape: f32[1], index: 8, kind: input, shape index: {}]
  %s9 = inlined_call_operand.hbm [shape: f32[2,8,512], index: 9, kind: output, shape index: {}]
  %s10 = sld [smem:[#allocation0]]
  $region81: #{main_block_forward.1} parent=0
    _
  %s12 = ssub.s32 1, %s10
  %s13 = scalar_select 0, %s12, %s10
  %14 = sst [smem:[#allocation9]] %s8
  $region1: #{main_block_forward.1} parent=0
    #allocation10 [shape = 'u8[8192]{0}', space=vmem, size = 0x2000, scoped, tag = 'output window, operand 0']
    #allocation11 [shape = 's32[2]{0}', space=sflag, size = 0x8, scoped, tag = 'scoped memory for main_block_forward.1']
    %15 = vsyncpa [#allocation11], 0
    %s16 = scalar_lea.sflag [#allocation11], 1
    %17 = vsyncpa %s16, 0
    loop: start=0, step=1, limit=34
    $region2: #{main_block_forward.1} parent=1 // loop_pre_header
      _
    $region3: #{main_block_forward.1} parent=1 // loop_header
      %s19 = sphi 0, %s23
      %p20 = scmp.ge.s32.totalorder %s19, 34
      %s26 = sphi 0, %s45
      %s27 = sphi 0, %s41
      %s28 = sphi 0, %s37
      %s29 = sphi 0, %s26
      %s30 = sphi 0, %s27
      %s31 = sphi 0, %s28
      %s32 = sphi 0, %s29
      %s33 = sphi 0, %s30
      %s34 = sphi 0, %s31
      %s50 = sphi 0, %s52
      %s53 = sphi 0, %s50
      %s54 = sphi 0, %s53
      %s70 = sphi 0, %s54
      %s82 = sphi 0, %s84
      %s85 = sphi 0, %s82
      %s86 = sphi 0, %s85
      %s102 = sphi 0, %s86
      %s106 = sphi 0, %s106
      %s108 = sphi 0, %s106
      %s109 = sphi 0, %s108
      %s123 = sphi 0, %s109
      %s127 = sphi 0, %s127
      %s129 = sphi 0, %s127
      %s130 = sphi 0, %s129
      %s144 = sphi 0, %s130
      %s148 = sphi 0, %s148
      %s150 = sphi 0, %s148
      %s151 = sphi 0, %s150
      %s165 = sphi 0, %s151
      %s169 = sphi 0, %s169
      %s171 = sphi 0, %s169
      %s172 = sphi 0, %s171
      %s186 = sphi 0, %s172
      %s190 = sphi 0, %s190
      %s192 = sphi 0, %s190
      %s193 = sphi 0, %s192
      %s207 = sphi 0, %s193
      %s211 = sphi 0, %s211
      %s213 = sphi 0, %s211
      %s214 = sphi 0, %s213
      %s228 = sphi 0, %s214
      %s232 = sphi 0, %s232
      %s234 = sphi 0, %s232
      %s235 = sphi 0, %s234
      %s249 = sphi 0, %s235
      %s257 = sphi 0, %s259
      %s260 = sphi 0, %s257
      %s261 = sphi 0, %s260
      %s277 = sphi 0, %s261
    $region4: #{main_block_forward.1} parent=1 // loop_header_branch
      %22 = sbr.rel (%p20) target = $region8
    $region5: #{main_block_forward.1} parent=1 // loop_body
      %s24 = ssub.s32 %s19, 1
      %s25 = ssub.s32 %s19, 2
      %s35 = sadd.s32 1, %s28
      %p36 = scmp.ge.s32.totalorder %s35, 4
      %s37 = scalar_select %p36, 0, %s35
      %s38 = sadd.s32 1, %s27
      %s39 = scalar_select %p36, %s38, %s27
      %p40 = scmp.ge.s32.totalorder %s39, 4
      %s41 = scalar_select %p40, 0, %s39
      %s42 = sadd.s32 1, %s26
      %s43 = scalar_select %p40, %s42, %s26
      %p44 = scmp.ge.s32.totalorder %s43, 2
      %s45 = scalar_select %p44, 0, %s43
      %s46 = ssub.s32 %s26, %s45
      %s47 = ssub.s32 %s27, %s41
      %s48 = sor.u32 %s46, %s47
      %p49 = scmp.eq.s32.totalorder %s48, 0
      %s51 = sadd.s32 %s50, 1
      %s52 = scalar_select %p49, %s50, %s51
      %p55 = pneg %p49
      %p56 = scmp.eq.s32.totalorder %s19, 31
      %p57 = por %p55, %p56
      %p58 = scmp.ne.s32.totalorder %s50, %s53
      %p59 = scmp.eq.s32.totalorder %s19, 0
      %p60 = por %p58, %p59
      %p61 = scmp.ne.s32.totalorder %s50, %s53
      %p62 = scmp.eq.s32.totalorder %s24, 31
      %p63 = por %p61, %p62
      %p64 = scmp.ne.s32.totalorder %s53, %s54
      %p65 = scmp.eq.s32.totalorder %s24, 0
      %p66 = por %p64, %p65
      %p67 = scmp.ne.s32.totalorder %s53, %s54
      %p68 = scmp.eq.s32.totalorder %s25, 31
      %p69 = por %p67, %p68
      %p71 = scmp.ne.s32.totalorder %s54, %s70
      %p72 = scmp.eq.s32.totalorder %s25, 0
      %p73 = por %p71, %p72
      %p74 = scmp.eq.s32.totalorder %s27, 0
      %s75 = scalar_select %p74, %s28, 0
      %p76 = scmp.eq.s32.totalorder %s41, 0
      %s77 = scalar_select %p76, %s37, 0
      %s78 = ssub.s32 %s26, %s45
      %s79 = ssub.s32 %s75, %s77
      %s80 = sor.u32 %s78, %s79
      %p81 = scmp.eq.s32.totalorder %s80, 0
      %s83 = sadd.s32 %s82, 1
      %s84 = scalar_select %p81, %s82, %s83
      %p87 = pneg %p81
      %p88 = scmp.eq.s32.totalorder %s19, 31
      %p89 = por %p87, %p88
      %p90 = scmp.ne.s32.totalorder %s82, %s85
      %p91 = scmp.eq.s32.totalorder %s19, 0
      %p92 = por %p90, %p91
      %p93 = scmp.ne.s32.totalorder %s82, %s85
      %p94 = scmp.eq.s32.totalorder %s24, 31
      %p95 = por %p93, %p94
      %p96 = scmp.ne.s32.totalorder %s85, %s86
      %p97 = scmp.eq.s32.totalorder %s24, 0
      %p98 = por %p96, %p97
      %p99 = scmp.ne.s32.totalorder %s85, %s86
      %p100 = scmp.eq.s32.totalorder %s25, 31
      %p101 = por %p99, %p100
      %p103 = scmp.ne.s32.totalorder %s86, %s102
      %p104 = scmp.eq.s32.totalorder %s25, 0
      %p105 = por %p103, %p104
      %s107 = sadd.s32 %s106, 1
      %p110 = scmp.eq.s32.totalorder %s19, 31
      %p111 = scmp.ne.s32.totalorder %s106, %s108
      %p112 = scmp.eq.s32.totalorder %s19, 0
      %p113 = por %p111, %p112
      %p114 = scmp.ne.s32.totalorder %s106, %s108
      %p115 = scmp.eq.s32.totalorder %s24, 31
      %p116 = por %p114, %p115
      %p117 = scmp.ne.s32.totalorder %s108, %s109
      %p118 = scmp.eq.s32.totalorder %s24, 0
      %p119 = por %p117, %p118
      %p120 = scmp.ne.s32.totalorder %s108, %s109
      %p121 = scmp.eq.s32.totalorder %s25, 31
      %p122 = por %p120, %p121
      %p124 = scmp.ne.s32.totalorder %s109, %s123
      %p125 = scmp.eq.s32.totalorder %s25, 0
      %p126 = por %p124, %p125
      %s128 = sadd.s32 %s127, 1
      %p131 = scmp.eq.s32.totalorder %s19, 31
      %p132 = scmp.ne.s32.totalorder %s127, %s129
      %p133 = scmp.eq.s32.totalorder %s19, 0
      %p134 = por %p132, %p133
      %p135 = scmp.ne.s32.totalorder %s127, %s129
      %p136 = scmp.eq.s32.totalorder %s24, 31
      %p137 = por %p135, %p136
      %p138 = scmp.ne.s32.totalorder %s129, %s130
      %p139 = scmp.eq.s32.totalorder %s24, 0
      %p140 = por %p138, %p139
      %p141 = scmp.ne.s32.totalorder %s129, %s130
      %p142 = scmp.eq.s32.totalorder %s25, 31
      %p143 = por %p141, %p142
      %p145 = scmp.ne.s32.totalorder %s130, %s144
      %p146 = scmp.eq.s32.totalorder %s25, 0
      %p147 = por %p145, %p146
      %s149 = sadd.s32 %s148, 1
      %p152 = scmp.eq.s32.totalorder %s19, 31
      %p153 = scmp.ne.s32.totalorder %s148, %s150
      %p154 = scmp.eq.s32.totalorder %s19, 0
      %p155 = por %p153, %p154
      %p156 = scmp.ne.s32.totalorder %s148, %s150
      %p157 = scmp.eq.s32.totalorder %s24, 31
      %p158 = por %p156, %p157
      %p159 = scmp.ne.s32.totalorder %s150, %s151
      %p160 = scmp.eq.s32.totalorder %s24, 0
      %p161 = por %p159, %p160
      %p162 = scmp.ne.s32.totalorder %s150, %s151
      %p163 = scmp.eq.s32.totalorder %s25, 31
      %p164 = por %p162, %p163
      %p166 = scmp.ne.s32.totalorder %s151, %s165
      %p167 = scmp.eq.s32.totalorder %s25, 0
      %p168 = por %p166, %p167
      %s170 = sadd.s32 %s169, 1
      %p173 = scmp.eq.s32.totalorder %s19, 31
      %p174 = scmp.ne.s32.totalorder %s169, %s171
      %p175 = scmp.eq.s32.totalorder %s19, 0
      %p176 = por %p174, %p175
      %p177 = scmp.ne.s32.totalorder %s169, %s171
      %p178 = scmp.eq.s32.totalorder %s24, 31
      %p179 = por %p177, %p178
      %p180 = scmp.ne.s32.totalorder %s171, %s172
      %p181 = scmp.eq.s32.totalorder %s24, 0
      %p182 = por %p180, %p181
      %p183 = scmp.ne.s32.totalorder %s171, %s172
      %p184 = scmp.eq.s32.totalorder %s25, 31
      %p185 = por %p183, %p184
      %p187 = scmp.ne.s32.totalorder %s172, %s186
      %p188 = scmp.eq.s32.totalorder %s25, 0
      %p189 = por %p187, %p188
      %s191 = sadd.s32 %s190, 1
      %p194 = scmp.eq.s32.totalorder %s19, 31
      %p195 = scmp.ne.s32.totalorder %s190, %s192
      %p196 = scmp.eq.s32.totalorder %s19, 0
      %p197 = por %p195, %p196
      %p198 = scmp.ne.s32.totalorder %s190, %s192
      %p199 = scmp.eq.s32.totalorder %s24, 31
      %p200 = por %p198, %p199
      %p201 = scmp.ne.s32.totalorder %s192, %s193
      %p202 = scmp.eq.s32.totalorder %s24, 0
      %p203 = por %p201, %p202
      %p204 = scmp.ne.s32.totalorder %s192, %s193
      %p205 = scmp.eq.s32.totalorder %s25, 31
      %p206 = por %p204, %p205
      %p208 = scmp.ne.s32.totalorder %s193, %s207
      %p209 = scmp.eq.s32.totalorder %s25, 0
      %p210 = por %p208, %p209
      %s212 = sadd.s32 %s211, 1
      %p215 = scmp.eq.s32.totalorder %s19, 31
      %p216 = scmp.ne.s32.totalorder %s211, %s213
      %p217 = scmp.eq.s32.totalorder %s19, 0
      %p218 = por %p216, %p217
      %p219 = scmp.ne.s32.totalorder %s211, %s213
      %p220 = scmp.eq.s32.totalorder %s24, 31
      %p221 = por %p219, %p220
      %p222 = scmp.ne.s32.totalorder %s213, %s214
      %p223 = scmp.eq.s32.totalorder %s24, 0
      %p224 = por %p222, %p223
      %p225 = scmp.ne.s32.totalorder %s213, %s214
      %p226 = scmp.eq.s32.totalorder %s25, 31
      %p227 = por %p225, %p226
      %p229 = scmp.ne.s32.totalorder %s214, %s228
      %p230 = scmp.eq.s32.totalorder %s25, 0
      %p231 = por %p229, %p230
      %s233 = sadd.s32 %s232, 1
      %p236 = scmp.eq.s32.totalorder %s19, 31
      %p237 = scmp.ne.s32.totalorder %s232, %s234
      %p238 = scmp.eq.s32.totalorder %s19, 0
      %p239 = por %p237, %p238
      %p240 = scmp.ne.s32.totalorder %s232, %s234
      %p241 = scmp.eq.s32.totalorder %s24, 31
      %p242 = por %p240, %p241
      %p243 = scmp.ne.s32.totalorder %s234, %s235
      %p244 = scmp.eq.s32.totalorder %s24, 0
      %p245 = por %p243, %p244
      %p246 = scmp.ne.s32.totalorder %s234, %s235
      %p247 = scmp.eq.s32.totalorder %s25, 31
      %p248 = por %p246, %p247
      %p250 = scmp.ne.s32.totalorder %s235, %s249
      %p251 = scmp.eq.s32.totalorder %s25, 0
      %p252 = por %p250, %p251
      %s253 = ssub.s32 %s26, %s45
      %s254 = ssub.s32 %s27, %s41
      %s255 = sor.u32 %s253, %s254
      %p256 = scmp.eq.s32.totalorder %s255, 0
      %s258 = sadd.s32 %s257, 1
      %s259 = scalar_select %p256, %s257, %s258
      %p262 = pneg %p256
      %p263 = scmp.eq.s32.totalorder %s19, 31
      %p264 = por %p262, %p263
      %p265 = scmp.ne.s32.totalorder %s257, %s260
      %p266 = scmp.eq.s32.totalorder %s19, 0
      %p267 = por %p265, %p266
      %p268 = scmp.ne.s32.totalorder %s257, %s260
      %p269 = scmp.eq.s32.totalorder %s24, 31
      %p270 = por %p268, %p269
      %p271 = scmp.ne.s32.totalorder %s260, %s261
      %p272 = scmp.eq.s32.totalorder %s24, 0
      %p273 = por %p271, %p272
      %p274 = scmp.ne.s32.totalorder %s260, %s261
      %p275 = scmp.eq.s32.totalorder %s25, 31
      %p276 = por %p274, %p275
      %p278 = scmp.ne.s32.totalorder %s261, %s277
      %p279 = scmp.eq.s32.totalorder %s25, 0
      %p280 = por %p278, %p279
      %p281 = scmp.le.s32.totalorder 1, %s19
      %p282 = scmp.lt.s32.totalorder %s19, 33
      %p283 = pnand %p281, %p282
      %p284 = pneg %p283
      // Predicated region
      $region9: #{main_block_forward.1} parent=5 // pred_check
        _
      $region10: #{main_block_forward.1} parent=5 // pred_check_branch
        %286 = sbr.rel (%p283) target = $region12
      $region11: #{main_block_forward.1} parent=5 // pred_region
        %s287 = ssub.s32 %s19, 1
        // Predicated region
        $region13: #{main_block_forward.1} parent=11 // pred_check
          %p288 = pneg %p119
        $region14: #{main_block_forward.1} parent=11 // pred_check_branch
          %290 = sbr.rel (%p288) target = $region16
        $region15: #{main_block_forward.1} parent=11 // pred_region
          _
        $region16: #{main_block_forward.1} parent=11 // pred_fallthru
          _
        // Predicated region
        $region17: #{main_block_forward.1} parent=11 // pred_check
          %p291 = pneg %p140
        $region18: #{main_block_forward.1} parent=11 // pred_check_branch
          %293 = sbr.rel (%p291) target = $region20
        $region19: #{main_block_forward.1} parent=11 // pred_region
          _
        $region20: #{main_block_forward.1} parent=11 // pred_fallthru
          _
        // Predicated region
        $region21: #{main_block_forward.1} parent=11 // pred_check
          %p294 = pneg %p161
        $region22: #{main_block_forward.1} parent=11 // pred_check_branch
          %296 = sbr.rel (%p294) target = $region24
        $region23: #{main_block_forward.1} parent=11 // pred_region
          _
        $region24: #{main_block_forward.1} parent=11 // pred_fallthru
          _
        // Predicated region
        $region25: #{main_block_forward.1} parent=11 // pred_check
          %p297 = pneg %p182
        $region26: #{main_block_forward.1} parent=11 // pred_check_branch
          %299 = sbr.rel (%p297) target = $region28
        $region27: #{main_block_forward.1} parent=11 // pred_region
          _
        $region28: #{main_block_forward.1} parent=11 // pred_fallthru
          _
        // Predicated region
        $region29: #{main_block_forward.1} parent=11 // pred_check
          %p300 = pneg %p203
        $region30: #{main_block_forward.1} parent=11 // pred_check_branch
          %302 = sbr.rel (%p300) target = $region32
        $region31: #{main_block_forward.1} parent=11 // pred_region
          _
        $region32: #{main_block_forward.1} parent=11 // pred_fallthru
          _
        // Predicated region
        $region33: #{main_block_forward.1} parent=11 // pred_check
          %p303 = pneg %p224
        $region34: #{main_block_forward.1} parent=11 // pred_check_branch
          %305 = sbr.rel (%p303) target = $region36
        $region35: #{main_block_forward.1} parent=11 // pred_region
          _
        $region36: #{main_block_forward.1} parent=11 // pred_fallthru
          _
        // Predicated region
        $region37: #{main_block_forward.1} parent=11 // pred_check
          %p306 = pneg %p245
        $region38: #{main_block_forward.1} parent=11 // pred_check_branch
          %308 = sbr.rel (%p306) target = $region40
        $region39: #{main_block_forward.1} parent=11 // pred_region
          _
        $region40: #{main_block_forward.1} parent=11 // pred_fallthru
          _
      $region12: #{main_block_forward.1} parent=5 // pred_fallthru
        _
      %p309 = scmp.lt.s32.totalorder %s19, 32
      // Predicated region
      $region41: #{main_block_forward.1} parent=5 // pred_check
        %p310 = pneg %p309
      $region42: #{main_block_forward.1} parent=5 // pred_check_branch
        %312 = sbr.rel (%p310) target = $region44
      $region43: #{main_block_forward.1} parent=5 // pred_region
        // Predicated region
        $region45: #{main_block_forward.1} parent=43 // pred_check
          %p313 = pneg %p60
        $region46: #{main_block_forward.1} parent=43 // pred_check_branch
          %315 = sbr.rel (%p313) target = $region48
        $region47: #{main_block_forward.1} parent=43 // pred_region
          %p316 = scmp.lt.s32.totalorder %s26, 1
          %s317 = scalar_select %p316, %s26, 1
          %p318 = scmp.lt.s32.totalorder %s27, 3
          %s319 = scalar_select %p318, %s27, 3
          %s320 = smul.addr %s317, 4
          %s321 = sadd.s32 %s319, %s320
          %s322 = smul.addr %s321, 4
          %s323 = scalar_lea.vmem %s0, %s322
        $region48: #{main_block_forward.1} parent=43 // pred_fallthru
          _
        // Predicated region
        $region49: #{main_block_forward.1} parent=43 // pred_check
          %p324 = pneg %p92
        $region50: #{main_block_forward.1} parent=43 // pred_check_branch
          %326 = sbr.rel (%p324) target = $region52
        $region51: #{main_block_forward.1} parent=43 // pred_region
          %p327 = scmp.eq.s32.totalorder %s27, 0
          %s328 = scalar_select %p327, %s28, 0
          %p329 = scmp.lt.s32.totalorder %s26, 1
          %s330 = scalar_select %p329, %s26, 1
          %p331 = scmp.lt.s32.totalorder %s328, 3
          %s332 = scalar_select %p331, %s328, 3
          %s333 = smul.addr %s330, 4
          %s334 = sadd.s32 %s332, %s333
          %s335 = smul.addr %s334, 4
          %s336 = scalar_lea.vmem %s1, %s335
          %p337 = scmp.eq.s32.totalorder %s27, 0
          %s338 = scalar_select %p337, %s28, 0
        $region52: #{main_block_forward.1} parent=43 // pred_fallthru
          _
      $region44: #{main_block_forward.1} parent=5 // pred_fallthru
        _
      %p339 = scmp.le.s32.totalorder 1, %s19
      %p340 = scmp.lt.s32.totalorder %s19, 33
      %p341 = pnand %p339, %p340
      %p342 = pneg %p341
      // Predicated region
      $region53: #{main_block_forward.1} parent=5 // pred_check
        _
      $region54: #{main_block_forward.1} parent=5 // pred_check_branch
        %344 = sbr.rel (%p341) target = $region56
      $region55: #{main_block_forward.1} parent=5 // pred_region
        %s345 = ssub.s32 %s19, 1
        %p346 = scmp.lt.s32.totalorder %s29, 1
        %s347 = scalar_select %p346, %s29, 1
        %p348 = scmp.lt.s32.totalorder %s30, 3
        %s349 = scalar_select %p348, %s30, 3
        %s350 = smul.addr %s347, 4
        %s351 = sadd.s32 %s349, %s350
        %s352 = smul.addr %s351, 4
        %s353 = scalar_lea.vmem %s0, %s352
        %p354 = pneg %p66
        %p355 = pneg %p63
        %p356 = scmp.eq.s32.totalorder %s30, 0
        %s357 = scalar_select %p356, %s31, 0
        %p358 = scmp.lt.s32.totalorder %s29, 1
        %s359 = scalar_select %p358, %s29, 1
        %p360 = scmp.lt.s32.totalorder %s357, 3
        %s361 = scalar_select %p360, %s357, 3
        %s362 = smul.addr %s359, 4
        %s363 = sadd.s32 %s361, %s362
        %s364 = smul.addr %s363, 4
        %s365 = scalar_lea.vmem %s1, %s364
        %p366 = pneg %p98
        %p367 = pneg %p95
        %p368 = pneg %p119
        %p369 = pneg %p116
        %p370 = pneg %p140
        %p371 = pneg %p137
        %p372 = pneg %p161
        %p373 = pneg %p158
        %p374 = pneg %p182
        %p375 = pneg %p179
        %p376 = pneg %p203
        %p377 = pneg %p200
        %p378 = pneg %p224
        %p379 = pneg %p221
        %p380 = pneg %p245
        %p381 = pneg %p242
        %p382 = pneg %p273
        %p383 = pneg %p270
        %s384 = sand.u32 %s260, 1
        %s385 = scalar_lea.sflag [#allocation11], %s384
        %s386 = sand.u32 %s260, 1
        %s387 = smul.addr %s386, 8
        %s388 = scalar_lea.vmem [#allocation10], %s387
        %p389 = scmp.lt.s32.totalorder %s29, 1
        %s390 = scalar_select %p389, %s29, 1
        %p391 = scmp.lt.s32.totalorder %s30, 3
        %s392 = scalar_select %p391, %s30, 3
        %s393 = smul.addr %s390, 4
        %s394 = sadd.s32 %s392, %s393
        %s395 = smul.addr %s394, 4
        %s396 = scalar_lea.vmem %s0, %s395
        %p397 = scmp.eq.s32.totalorder %s30, 0
        %s398 = scalar_select %p397, %s31, 0
        %p399 = scmp.lt.s32.totalorder %s29, 1
        %s400 = scalar_select %p399, %s29, 1
        %p401 = scmp.lt.s32.totalorder %s398, 3
        %s402 = scalar_select %p401, %s398, 3
        %s403 = smul.addr %s400, 4
        %s404 = sadd.s32 %s402, %s403
        %s405 = smul.addr %s404, 4
        %s406 = scalar_lea.vmem %s1, %s405
        %p407 = scmp.eq.s32.totalorder %s30, 0
        %s408 = scalar_select %p407, %s31, 0
        %p409 = scmp.eq.s32.totalorder %s30, 0
        // Predicated region
        $region57: #{main_block_forward.1} parent=55 // pred_check
          %p410 = pneg %p409
        $region58: #{main_block_forward.1} parent=55 // pred_check_branch
          %412 = sbr.rel (%p410) target = $region60
        $region59: #{main_block_forward.1} parent=55 // pred_region
          %v413 = vld [vmem:[%s406] sm:$0xf]
          %v414 = vld [vmem:[%s2] sm:$0xff]
          %v415 = vld [vmem:[%s3] sm:$0xff]
          %417 = vset.pattern.permute.xlu0 0
          %418 = vperm.xlu0 %417, %v415
          %v419 = vpop.permute.xlu0 %418
          %vm421 = vcmask 31744
          %v423 = vsel %vm421, %v414, 0
          %vm425 = vcmask 1043456
          %v427 = vsel %vm425, %v413, 0
          %429 = vmatprep.subr.mxu0 0.0
          %430 = vmatpush1.msra.mxu0 %v427
          %431 = vmatprep.subr.mxu0 0.0
          %432 = vmatpush1.msra.mxu0 0.0
          %433 = vmatprep.subr.mxu0 0.0
          %434 = vmatpush1.msra.mxu0 0.0
          %435 = vmatprep.subr.mxu0 0.0
          %436 = vmatpush1.msra.mxu0 0.0
          %437 = vmatprep.subr.mxu0 0.0
          %438 = vmatpush1.msra.mxu0 0.0
          %439 = vmatprep.subr.mxu0 0.0
          %440 = vmatpush1.msra.mxu0 0.0
          %441 = vmatprep.subr.mxu0 0.0
          %442 = vmatpush1.msra.mxu0 0.0
          %443 = vmatprep.subr.mxu0 0.0
          %444 = vmatpush1.msra.mxu0 0.0
          %445 = vmatprep.subr.mxu0 0.0
          %446 = vmatpush1.msra.mxu0 0.0
          %447 = vmatprep.subr.mxu0 0.0
          %448 = vmatpush1.msra.mxu0 0.0
          %449 = vmatprep.subr.mxu0 0.0
          %450 = vmatpush1.msra.mxu0 0.0
          %451 = vmatprep.subr.mxu0 0.0
          %452 = vmatpush1.msra.mxu0 0.0
          %453 = vmatprep.subr.mxu0 0.0
          %454 = vmatpush1.msra.mxu0 0.0
          %455 = vmatprep.subr.mxu0 0.0
          %456 = vmatpush1.msra.mxu0 0.0
          %457 = vmatprep.subr.mxu0 0.0
          %458 = vmatpush1.msra.mxu0 0.0
          %459 = vmatprep.subr.mxu0 0.0
          %460 = vmatpush1.msra.mxu0 0.0
          %461 = vmatprep.subr.mxu0 0.0
          %462 = vmatpush1.msra.mxu0 0.0
          %463 = vmatprep.subr.mxu0 0.0
          %464 = vmatpush1.msra.mxu0 0.0
          %465 = vmatprep.subr.mxu0 0.0
          %466 = vmatpush1.msra.mxu0 0.0
          %467 = vmatprep.subr.mxu0 0.0
          %468 = vmatpush1.msra.mxu0 0.0
          %469 = vmatprep.subr.mxu0 0.0
          %470 = vmatpush1.msra.mxu0 0.0
          %471 = vmatprep.subr.mxu0 0.0
          %472 = vmatpush1.msra.mxu0 0.0
          %473 = vmatprep.subr.mxu0 0.0
          %474 = vmatpush1.msra.mxu0 0.0
          %475 = vmatprep.subr.mxu0 0.0
          %476 = vmatpush1.msra.mxu0 0.0
          %477 = vmatprep.subr.mxu0 0.0
          %478 = vmatpush1.msra.mxu0 0.0
          %479 = vmatprep.subr.mxu0 0.0
          %480 = vmatpush1.msra.mxu0 0.0
          %481 = vmatprep.subr.mxu0 0.0
          %482 = vmatpush1.msra.mxu0 0.0
          %483 = vmatprep.subr.mxu0 0.0
          %484 = vmatpush1.msra.mxu0 0.0
          %485 = vmatprep.subr.mxu0 0.0
          %486 = vmatpush1.msra.mxu0 0.0
          %487 = vmatprep.subr.mxu0 0.0
          %488 = vmatpush1.msra.mxu0 0.0
          %489 = vmatprep.subr.mxu0 0.0
          %490 = vmatpush1.msra.mxu0 0.0
          %491 = vmatprep.subr.mxu0 0.0
          %492 = vmatpush1.msra.mxu0 0.0
          %493 = vmatprep.mubr.f32.mxu0 0.0
          %494 = vmatmul.mubr.f32.gmra.mrb[0].mxu0 %v423
          %v495 = vpop.f32.mrb[0].mxu0
          %v496 = vadd.f32 %v419, %v495
          %v497 = vpop.f32.mrb[0].mxu0
          %498 = vdwg.mxu0
          %vm499 = vcmp.gt.f32.partialorder %v496, 0.0
          %v500 = vmul.f32 %v496, 0.01
          %v501 = vsel %vm499, %v496, %v500
          %v502 = vld [vmem:[%s6] sm:$0xff]
          %v503 = vld [vmem:[%s6 + $0x8] sm:$0xff]
          %v504 = vld [vmem:[%s7] sm:$0xff]
          %v505 = vld [vmem:[%s7 + $0x8] sm:$0xff]
          %507 = vset.pattern.permute.xlu0 0
          %508 = vperm.xlu0 %507, %v504
          %v509 = vpop.permute.xlu0 %508
          %512 = vset.pattern.permute.xlu0 0
          %513 = vperm.xlu0 %512, %v505
          %v514 = vpop.permute.xlu0 %513
          %vm516 = vcmask 64512
          %v518 = vsel %vm516, %v502, 0
          %v521 = vsel %vm516, %v503, 0
          %523 = vmatprep.subr.mxu0 0.0
          %524 = vmatpush1.msra.mxu0 %v501
          %525 = vmatprep.subr.mxu0 0.0
          %526 = vmatpush1.msra.mxu0 0.0
          %527 = vmatprep.subr.mxu0 0.0
          %528 = vmatpush1.msra.mxu0 0.0
          %529 = vmatprep.subr.mxu0 0.0
          %530 = vmatpush1.msra.mxu0 0.0
          %531 = vmatprep.subr.mxu0 0.0
          %532 = vmatpush1.msra.mxu0 0.0
          %533 = vmatprep.subr.mxu0 0.0
          %534 = vmatpush1.msra.mxu0 0.0
          %535 = vmatprep.subr.mxu0 0.0
          %536 = vmatpush1.msra.mxu0 0.0
          %537 = vmatprep.subr.mxu0 0.0
          %538 = vmatpush1.msra.mxu0 0.0
          %539 = vmatprep.subr.mxu0 0.0
          %540 = vmatpush1.msra.mxu0 0.0
          %541 = vmatprep.subr.mxu0 0.0
          %542 = vmatpush1.msra.mxu0 0.0
          %543 = vmatprep.subr.mxu0 0.0
          %544 = vmatpush1.msra.mxu0 0.0
          %545 = vmatprep.subr.mxu0 0.0
          %546 = vmatpush1.msra.mxu0 0.0
          %547 = vmatprep.subr.mxu0 0.0
          %548 = vmatpush1.msra.mxu0 0.0
          %549 = vmatprep.subr.mxu0 0.0
          %550 = vmatpush1.msra.mxu0 0.0
          %551 = vmatprep.subr.mxu0 0.0
          %552 = vmatpush1.msra.mxu0 0.0
          %553 = vmatprep.subr.mxu0 0.0
          %554 = vmatpush1.msra.mxu0 0.0
          %555 = vmatprep.subr.mxu0 0.0
          %556 = vmatpush1.msra.mxu0 0.0
          %557 = vmatprep.subr.mxu0 0.0
          %558 = vmatpush1.msra.mxu0 0.0
          %559 = vmatprep.subr.mxu0 0.0
          %560 = vmatpush1.msra.mxu0 0.0
          %561 = vmatprep.subr.mxu0 0.0
          %562 = vmatpush1.msra.mxu0 0.0
          %563 = vmatprep.subr.mxu0 0.0
          %564 = vmatpush1.msra.mxu0 0.0
          %565 = vmatprep.subr.mxu0 0.0
          %566 = vmatpush1.msra.mxu0 0.0
          %567 = vmatprep.subr.mxu0 0.0
          %568 = vmatpush1.msra.mxu0 0.0
          %569 = vmatprep.subr.mxu0 0.0
          %570 = vmatpush1.msra.mxu0 0.0
          %571 = vmatprep.subr.mxu0 0.0
          %572 = vmatpush1.msra.mxu0 0.0
          %573 = vmatprep.subr.mxu0 0.0
          %574 = vmatpush1.msra.mxu0 0.0
          %575 = vmatprep.subr.mxu0 0.0
          %576 = vmatpush1.msra.mxu0 0.0
          %577 = vmatprep.subr.mxu0 0.0
          %578 = vmatpush1.msra.mxu0 0.0
          %579 = vmatprep.subr.mxu0 0.0
          %580 = vmatpush1.msra.mxu0 0.0
          %581 = vmatprep.subr.mxu0 0.0
          %582 = vmatpush1.msra.mxu0 0.0
          %583 = vmatprep.subr.mxu0 0.0
          %584 = vmatpush1.msra.mxu0 0.0
          %585 = vmatprep.subr.mxu0 0.0
          %586 = vmatpush1.msra.mxu0 0.0
          %587 = vmatprep.mubr.f32.mxu0 0.0
          %588 = vmatmul.mubr.f32.gmra.mrb[0].mxu0 %v518
          %v589 = vpop.f32.mrb[0].mxu0
          %v590 = vadd.f32 %v509, %v589
          %v591 = vpop.f32.mrb[0].mxu0
          %592 = vmatprep.mubr.f32.mxu0 0.0
          %593 = vmatmul.mubr.f32.gmra.mrb[0].mxu0 %v521
          %v594 = vpop.f32.mrb[0].mxu0
          %v595 = vadd.f32 %v514, %v594
          %v596 = vpop.f32.mrb[0].mxu0
          %597 = vdwg.mxu0
          %s598 = smul.u32 %s31, 8
          %s599 = scalar_lea.vmem [#allocation7], %s598
          %600 = vst [vmem:[%s599] sm:$0xff] %v590
          %s601 = scalar_lea.vmem [#allocation8], %s598
          %602 = vst [vmem:[%s601] sm:$0xff] %v595
        $region60: #{main_block_forward.1} parent=55 // pred_fallthru
          _
        %p603 = scmp.eq.s32.totalorder %s31, 0
        // Predicated region
        $region61: #{main_block_forward.1} parent=55 // pred_check
          %p604 = pneg %p603
        $region62: #{main_block_forward.1} parent=55 // pred_check_branch
          %606 = sbr.rel (%p604) target = $region64
        $region63: #{main_block_forward.1} parent=55 // pred_region
          %v607 = vld [vmem:[%s396] sm:$0xf]
          %v608 = vld [vmem:[%s2] sm:$0xff]
          %v609 = vld [vmem:[%s3] sm:$0xff]
          %611 = vset.pattern.permute.xlu0 0
          %612 = vperm.xlu0 %611, %v609
          %v613 = vpop.permute.xlu0 %612
          %vm615 = vcmask 31744
          %v617 = vsel %vm615, %v608, 0
          %vm619 = vcmask 1043456
          %v621 = vsel %vm619, %v607, 0
          %623 = vmatprep.subr.mxu0 0.0
          %624 = vmatpush1.msra.mxu0 %v621
          %625 = vmatprep.subr.mxu0 0.0
          %626 = vmatpush1.msra.mxu0 0.0
          %627 = vmatprep.subr.mxu0 0.0
          %628 = vmatpush1.msra.mxu0 0.0
          %629 = vmatprep.subr.mxu0 0.0
          %630 = vmatpush1.msra.mxu0 0.0
          %631 = vmatprep.subr.mxu0 0.0
          %632 = vmatpush1.msra.mxu0 0.0
          %633 = vmatprep.subr.mxu0 0.0
          %634 = vmatpush1.msra.mxu0 0.0
          %635 = vmatprep.subr.mxu0 0.0
          %636 = vmatpush1.msra.mxu0 0.0
          %637 = vmatprep.subr.mxu0 0.0
          %638 = vmatpush1.msra.mxu0 0.0
          %639 = vmatprep.subr.mxu0 0.0
          %640 = vmatpush1.msra.mxu0 0.0
          %641 = vmatprep.subr.mxu0 0.0
          %642 = vmatpush1.msra.mxu0 0.0
          %643 = vmatprep.subr.mxu0 0.0
          %644 = vmatpush1.msra.mxu0 0.0
          %645 = vmatprep.subr.mxu0 0.0
          %646 = vmatpush1.msra.mxu0 0.0
          %647 = vmatprep.subr.mxu0 0.0
          %648 = vmatpush1.msra.mxu0 0.0
          %649 = vmatprep.subr.mxu0 0.0
          %650 = vmatpush1.msra.mxu0 0.0
          %651 = vmatprep.subr.mxu0 0.0
          %652 = vmatpush1.msra.mxu0 0.0
          %653 = vmatprep.subr.mxu0 0.0
          %654 = vmatpush1.msra.mxu0 0.0
          %655 = vmatprep.subr.mxu0 0.0
          %656 = vmatpush1.msra.mxu0 0.0
          %657 = vmatprep.subr.mxu0 0.0
          %658 = vmatpush1.msra.mxu0 0.0
          %659 = vmatprep.subr.mxu0 0.0
          %660 = vmatpush1.msra.mxu0 0.0
          %661 = vmatprep.subr.mxu0 0.0
          %662 = vmatpush1.msra.mxu0 0.0
          %663 = vmatprep.subr.mxu0 0.0
          %664 = vmatpush1.msra.mxu0 0.0
          %665 = vmatprep.subr.mxu0 0.0
          %666 = vmatpush1.msra.mxu0 0.0
          %667 = vmatprep.subr.mxu0 0.0
          %668 = vmatpush1.msra.mxu0 0.0
          %669 = vmatprep.subr.mxu0 0.0
          %670 = vmatpush1.msra.mxu0 0.0
          %671 = vmatprep.subr.mxu0 0.0
          %672 = vmatpush1.msra.mxu0 0.0
          %673 = vmatprep.subr.mxu0 0.0
          %674 = vmatpush1.msra.mxu0 0.0
          %675 = vmatprep.subr.mxu0 0.0
          %676 = vmatpush1.msra.mxu0 0.0
          %677 = vmatprep.subr.mxu0 0.0
          %678 = vmatpush1.msra.mxu0 0.0
          %679 = vmatprep.subr.mxu0 0.0
          %680 = vmatpush1.msra.mxu0 0.0
          %681 = vmatprep.subr.mxu0 0.0
          %682 = vmatpush1.msra.mxu0 0.0
          %683 = vmatprep.subr.mxu0 0.0
          %684 = vmatpush1.msra.mxu0 0.0
          %685 = vmatprep.subr.mxu0 0.0
          %686 = vmatpush1.msra.mxu0 0.0
          %687 = vmatprep.mubr.f32.mxu0 0.0
          %688 = vmatmul.mubr.f32.gmra.mrb[0].mxu0 %v617
          %v689 = vpop.f32.mrb[0].mxu0
          %v690 = vadd.f32 %v613, %v689
          %v691 = vpop.f32.mrb[0].mxu0
          %692 = vdwg.mxu0
          %vm693 = vcmp.gt.f32.partialorder %v690, 0.0
          %v694 = vmul.f32 %v690, 0.01
          %v695 = vsel %vm693, %v690, %v694
          %696 = vst [vmem:[#allocation2] sm:$0xff] %v695
          %v697 = vld [vmem:[%s4] sm:$0xff]
          %v698 = vld [vmem:[%s5] sm:$0xff]
          %700 = vset.pattern.permute.xlu0 0
          %701 = vperm.xlu0 %700, %v698
          %v702 = vpop.permute.xlu0 %701
          %vm704 = vcmask 64512
          %v706 = vsel %vm704, %v697, 0
          %708 = vmatprep.subr.mxu0 0.0
          %709 = vmatpush1.msra.mxu0 %v695
          %710 = vmatprep.subr.mxu0 0.0
          %711 = vmatpush1.msra.mxu0 0.0
          %712 = vmatprep.subr.mxu0 0.0
          %713 = vmatpush1.msra.mxu0 0.0
          %714 = vmatprep.subr.mxu0 0.0
          %715 = vmatpush1.msra.mxu0 0.0
          %716 = vmatprep.subr.mxu0 0.0
          %717 = vmatpush1.msra.mxu0 0.0
          %718 = vmatprep.subr.mxu0 0.0
          %719 = vmatpush1.msra.mxu0 0.0
          %720 = vmatprep.subr.mxu0 0.0
          %721 = vmatpush1.msra.mxu0 0.0
          %722 = vmatprep.subr.mxu0 0.0
          %723 = vmatpush1.msra.mxu0 0.0
          %724 = vmatprep.subr.mxu0 0.0
          %725 = vmatpush1.msra.mxu0 0.0
          %726 = vmatprep.subr.mxu0 0.0
          %727 = vmatpush1.msra.mxu0 0.0
          %728 = vmatprep.subr.mxu0 0.0
          %729 = vmatpush1.msra.mxu0 0.0
          %730 = vmatprep.subr.mxu0 0.0
          %731 = vmatpush1.msra.mxu0 0.0
          %732 = vmatprep.subr.mxu0 0.0
          %733 = vmatpush1.msra.mxu0 0.0
          %734 = vmatprep.subr.mxu0 0.0
          %735 = vmatpush1.msra.mxu0 0.0
          %736 = vmatprep.subr.mxu0 0.0
          %737 = vmatpush1.msra.mxu0 0.0
          %738 = vmatprep.subr.mxu0 0.0
          %739 = vmatpush1.msra.mxu0 0.0
          %740 = vmatprep.subr.mxu0 0.0
          %741 = vmatpush1.msra.mxu0 0.0
          %742 = vmatprep.subr.mxu0 0.0
          %743 = vmatpush1.msra.mxu0 0.0
          %744 = vmatprep.subr.mxu0 0.0
          %745 = vmatpush1.msra.mxu0 0.0
          %746 = vmatprep.subr.mxu0 0.0
          %747 = vmatpush1.msra.mxu0 0.0
          %748 = vmatprep.subr.mxu0 0.0
          %749 = vmatpush1.msra.mxu0 0.0
          %750 = vmatprep.subr.mxu0 0.0
          %751 = vmatpush1.msra.mxu0 0.0
          %752 = vmatprep.subr.mxu0 0.0
          %753 = vmatpush1.msra.mxu0 0.0
          %754 = vmatprep.subr.mxu0 0.0
          %755 = vmatpush1.msra.mxu0 0.0
          %756 = vmatprep.subr.mxu0 0.0
          %757 = vmatpush1.msra.mxu0 0.0
          %758 = vmatprep.subr.mxu0 0.0
          %759 = vmatpush1.msra.mxu0 0.0
          %760 = vmatprep.subr.mxu0 0.0
          %761 = vmatpush1.msra.mxu0 0.0
          %762 = vmatprep.subr.mxu0 0.0
          %763 = vmatpush1.msra.mxu0 0.0
          %764 = vmatprep.subr.mxu0 0.0
          %765 = vmatpush1.msra.mxu0 0.0
          %766 = vmatprep.subr.mxu0 0.0
          %767 = vmatpush1.msra.mxu0 0.0
          %768 = vmatprep.subr.mxu0 0.0
          %769 = vmatpush1.msra.mxu0 0.0
          %770 = vmatprep.subr.mxu0 0.0
          %771 = vmatpush1.msra.mxu0 0.0
          %772 = vmatprep.mubr.f32.mxu0 0.0
          %773 = vmatmul.mubr.f32.gmra.mrb[0].mxu0 %v706
          %v774 = vpop.f32.mrb[0].mxu0
          %v775 = vadd.f32 %v702, %v774
          %v776 = vpop.f32.mrb[0].mxu0
          %777 = vdwg.mxu0
          %778 = vst [vmem:[#allocation3] sm:$0xff] %v775
          %779 = vst [vmem:[#allocation4] sm:$0x1] -inf
          %780 = vst [vmem:[#allocation5] sm:$0x1] 0.0
          %781 = vst [vmem:[#allocation6] sm:$0xff] 0.0
        $region64: #{main_block_forward.1} parent=55 // pred_fallthru
          _
        %s782 = smul.u32 %s31, 8
        %s783 = scalar_lea.vmem [#allocation7], %s782
        %v784 = vld [vmem:[%s783] sm:$0xff]
        %s785 = scalar_lea.vmem [#allocation8], %s782
        %v786 = vld [vmem:[%s785] sm:$0xff]
        %v787 = vld [vmem:[#allocation3] sm:$0xff]
        %788 = vxpose.xlu0.b32.start [1/16] %v784, 128
        %789 = vxpose.xlu0.b32.cont [2/16] 0.0, 128
        %790 = vxpose.xlu0.b32.cont [3/16] 0.0, 128
        %791 = vxpose.xlu0.b32.cont [4/16] 0.0, 128
        %792 = vxpose.xlu0.b32.cont [5/16] 0.0, 128
        %793 = vxpose.xlu0.b32.cont [6/16] 0.0, 128
        %794 = vxpose.xlu0.b32.cont [7/16] 0.0, 128
        %795 = vxpose.xlu0.b32.cont [8/16] 0.0, 128
        %796 = vxpose.xlu0.b32.cont [9/16] 0.0, 128
        %797 = vxpose.xlu0.b32.cont [10/16] 0.0, 128
        %798 = vxpose.xlu0.b32.cont [11/16] 0.0, 128
        %799 = vxpose.xlu0.b32.cont [12/16] 0.0, 128
        %800 = vxpose.xlu0.b32.cont [13/16] 0.0, 128
        %801 = vxpose.xlu0.b32.cont [14/16] 0.0, 128
        %802 = vxpose.xlu0.b32.cont [15/16] 0.0, 128
        %803 = vxpose.xlu0.b32.end [16/16] 0.0, 128
        %v804 = vpop.trf.xlu0
        %v805 = vpop.trf.xlu0
        %v806 = vpop.trf.xlu0
        %v807 = vpop.trf.xlu0
        %v808 = vpop.trf.xlu0
        %v809 = vpop.trf.xlu0
        %v810 = vpop.trf.xlu0
        %v811 = vpop.trf.xlu0
        %v812 = vpop.trf.xlu0
        %v813 = vpop.trf.xlu0
        %v814 = vpop.trf.xlu0
        %v815 = vpop.trf.xlu0
        %v816 = vpop.trf.xlu0
        %v817 = vpop.trf.xlu0
        %v818 = vpop.trf.xlu0
        %v819 = vpop.trf.xlu0
        %vm820 = vcmask 64512
        %v822 = vsel %vm820, %v804, 0
        %v825 = vsel %vm820, %v805, 0
        %v828 = vsel %vm820, %v806, 0
        %v831 = vsel %vm820, %v807, 0
        %v834 = vsel %vm820, %v808, 0
        %v837 = vsel %vm820, %v809, 0
        %v840 = vsel %vm820, %v810, 0
        %v843 = vsel %vm820, %v811, 0
        %v846 = vsel %vm820, %v812, 0
        %v849 = vsel %vm820, %v813, 0
        %v852 = vsel %vm820, %v814, 0
        %v855 = vsel %vm820, %v815, 0
        %v858 = vsel %vm820, %v816, 0
        %v861 = vsel %vm820, %v817, 0
        %v864 = vsel %vm820, %v818, 0
        %v867 = vsel %vm820, %v819, 0
        %869 = vmatprep.subr.mxu0 0.0
        %870 = vmatpush1.msra.mxu0 %v787
        %871 = vmatprep.subr.mxu0 0.0
        %872 = vmatpush1.msra.mxu0 0.0
        %873 = vmatprep.subr.mxu0 0.0
        %874 = vmatpush1.msra.mxu0 0.0
        %875 = vmatprep.subr.mxu0 0.0
        %876 = vmatpush1.msra.mxu0 0.0
        %877 = vmatprep.subr.mxu0 0.0
        %878 = vmatpush1.msra.mxu0 0.0
        %879 = vmatprep.subr.mxu0 0.0
        %880 = vmatpush1.msra.mxu0 0.0
        %881 = vmatprep.subr.mxu0 0.0
        %882 = vmatpush1.msra.mxu0 0.0
        %883 = vmatprep.subr.mxu0 0.0
        %884 = vmatpush1.msra.mxu0 0.0
        %885 = vmatprep.subr.mxu0 0.0
        %886 = vmatpush1.msra.mxu0 0.0
        %887 = vmatprep.subr.mxu0 0.0
        %888 = vmatpush1.msra.mxu0 0.0
        %889 = vmatprep.subr.mxu0 0.0
        %890 = vmatpush1.msra.mxu0 0.0
        %891 = vmatprep.subr.mxu0 0.0
        %892 = vmatpush1.msra.mxu0 0.0
        %893 = vmatprep.subr.mxu0 0.0
        %894 = vmatpush1.msra.mxu0 0.0
        %895 = vmatprep.subr.mxu0 0.0
        %896 = vmatpush1.msra.mxu0 0.0
        %897 = vmatprep.subr.mxu0 0.0
        %898 = vmatpush1.msra.mxu0 0.0
        %899 = vmatprep.subr.mxu0 0.0
        %900 = vmatpush1.msra.mxu0 0.0
        %901 = vmatprep.subr.mxu0 0.0
        %902 = vmatpush1.msra.mxu0 0.0
        %903 = vmatprep.subr.mxu0 0.0
        %904 = vmatpush1.msra.mxu0 0.0
        %905 = vmatprep.subr.mxu0 0.0
        %906 = vmatpush1.msra.mxu0 0.0
        %907 = vmatprep.subr.mxu0 0.0
        %908 = vmatpush1.msra.mxu0 0.0
        %909 = vmatprep.subr.mxu0 0.0
        %910 = vmatpush1.msra.mxu0 0.0
        %911 = vmatprep.subr.mxu0 0.0
        %912 = vmatpush1.msra.mxu0 0.0
        %913 = vmatprep.subr.mxu0 0.0
        %914 = vmatpush1.msra.mxu0 0.0
        %915 = vmatprep.subr.mxu0 0.0
        %916 = vmatpush1.msra.mxu0 0.0
        %917 = vmatprep.subr.mxu0 0.0
        %918 = vmatpush1.msra.mxu0 0.0
        %919 = vmatprep.subr.mxu0 0.0
        %920 = vmatpush1.msra.mxu0 0.0
        %921 = vmatprep.subr.mxu0 0.0
        %922 = vmatpush1.msra.mxu0 0.0
        %923 = vmatprep.subr.mxu0 0.0
        %924 = vmatpush1.msra.mxu0 0.0
        %925 = vmatprep.subr.mxu0 0.0
        %926 = vmatpush1.msra.mxu0 0.0
        %927 = vmatprep.subr.mxu0 0.0
        %928 = vmatpush1.msra.mxu0 0.0
        %929 = vmatprep.subr.mxu0 0.0
        %930 = vmatpush1.msra.mxu0 0.0
        %931 = vmatprep.subr.mxu0 0.0
        %932 = vmatpush1.msra.mxu0 0.0
        %933 = vmatprep.mubr.f32.mxu0 0.0
        %934 = vmatmul.mubr.f32.gmra.mrb[0].mxu0 %v822
        %v935 = vpop.f32.mrb[0].mxu0
        %v936 = vadd.f32 0.0, %v935
        %v937 = vpop.f32.mrb[0].mxu0
        %938 = vmatprep.mubr.f32.mxu0 0.0
        %939 = vmatmul.mubr.f32.gmra.mrb[0].mxu0 %v825
        %v940 = vpop.f32.mrb[0].mxu0
        %v941 = vadd.f32 0.0, %v940
        %v942 = vpop.f32.mrb[0].mxu0
        %943 = vmatprep.mubr.f32.mxu0 0.0
        %944 = vmatmul.mubr.f32.gmra.mrb[0].mxu0 %v828
        %v945 = vpop.f32.mrb[0].mxu0
        %v946 = vadd.f32 0.0, %v945
        %v947 = vpop.f32.mrb[0].mxu0
        %948 = vmatprep.mubr.f32.mxu0 0.0
        %949 = vmatmul.mubr.f32.gmra.mrb[0].mxu0 %v831
        %v950 = vpop.f32.mrb[0].mxu0
        %v951 = vadd.f32 0.0, %v950
        %v952 = vpop.f32.mrb[0].mxu0
        %953 = vmatprep.mubr.f32.mxu0 0.0
        %954 = vmatmul.mubr.f32.gmra.mrb[0].mxu0 %v834
        %v955 = vpop.f32.mrb[0].mxu0
        %v956 = vadd.f32 0.0, %v955
        %v957 = vpop.f32.mrb[0].mxu0
        %958 = vmatprep.mubr.f32.mxu0 0.0
        %959 = vmatmul.mubr.f32.gmra.mrb[0].mxu0 %v837
        %v960 = vpop.f32.mrb[0].mxu0
        %v961 = vadd.f32 0.0, %v960
        %v962 = vpop.f32.mrb[0].mxu0
        %963 = vmatprep.mubr.f32.mxu0 0.0
        %964 = vmatmul.mubr.f32.gmra.mrb[0].mxu0 %v840
        %v965 = vpop.f32.mrb[0].mxu0
        %v966 = vadd.f32 0.0, %v965
        %v967 = vpop.f32.mrb[0].mxu0
        %968 = vmatprep.mubr.f32.mxu0 0.0
        %969 = vmatmul.mubr.f32.gmra.mrb[0].mxu0 %v843
        %v970 = vpop.f32.mrb[0].mxu0
        %v971 = vadd.f32 0.0, %v970
        %v972 = vpop.f32.mrb[0].mxu0
        %973 = vmatprep.mubr.f32.mxu0 0.0
        %974 = vmatmul.mubr.f32.gmra.mrb[0].mxu0 %v846
        %v975 = vpop.f32.mrb[0].mxu0
        %v976 = vadd.f32 0.0, %v975
        %v977 = vpop.f32.mrb[0].mxu0
        %978 = vmatprep.mubr.f32.mxu0 0.0
        %979 = vmatmul.mubr.f32.gmra.mrb[0].mxu0 %v849
        %v980 = vpop.f32.mrb[0].mxu0
        %v981 = vadd.f32 0.0, %v980
        %v982 = vpop.f32.mrb[0].mxu0
        %983 = vmatprep.mubr.f32.mxu0 0.0
        %984 = vmatmul.mubr.f32.gmra.mrb[0].mxu0 %v852
        %v985 = vpop.f32.mrb[0].mxu0
        %v986 = vadd.f32 0.0, %v985
        %v987 = vpop.f32.mrb[0].mxu0
        %988 = vmatprep.mubr.f32.mxu0 0.0
        %989 = vmatmul.mubr.f32.gmra.mrb[0].mxu0 %v855
        %v990 = vpop.f32.mrb[0].mxu0
        %v991 = vadd.f32 0.0, %v990
        %v992 = vpop.f32.mrb[0].mxu0
        %993 = vmatprep.mubr.f32.mxu0 0.0
        %994 = vmatmul.mubr.f32.gmra.mrb[0].mxu0 %v858
        %v995 = vpop.f32.mrb[0].mxu0
        %v996 = vadd.f32 0.0, %v995
        %v997 = vpop.f32.mrb[0].mxu0
        %998 = vmatprep.mubr.f32.mxu0 0.0
        %999 = vmatmul.mubr.f32.gmra.mrb[0].mxu0 %v861
        %v1000 = vpop.f32.mrb[0].mxu0
        %v1001 = vadd.f32 0.0, %v1000
        %v1002 = vpop.f32.mrb[0].mxu0
        %1003 = vmatprep.mubr.f32.mxu0 0.0
        %1004 = vmatmul.mubr.f32.gmra.mrb[0].mxu0 %v864
        %v1005 = vpop.f32.mrb[0].mxu0
        %v1006 = vadd.f32 0.0, %v1005
        %v1007 = vpop.f32.mrb[0].mxu0
        %1008 = vmatprep.mubr.f32.mxu0 0.0
        %1009 = vmatmul.mubr.f32.gmra.mrb[0].mxu0 %v867
        %v1010 = vpop.f32.mrb[0].mxu0
        %v1011 = vadd.f32 0.0, %v1010
        %v1012 = vpop.f32.mrb[0].mxu0
        %1013 = vdwg.mxu0
        %v1014 = vld [vmem:[#allocation4] sm:$0x1]
        %v1015 = vmax.f32 %v936, %v956
        %v1016 = vmax.f32 %v941, %v961
        %v1017 = vmax.f32 %v946, %v966
        %v1018 = vmax.f32 %v951, %v971
        %v1019 = vmax.f32 %v1015, %v976
        %v1020 = vmax.f32 %v1016, %v981
        %v1021 = vmax.f32 %v1017, %v986
        %v1022 = vmax.f32 %v1018, %v991
        %v1023 = vmax.f32 %v1019, %v996
        %v1024 = vmax.f32 %v1020, %v1001
        %v1025 = vmax.f32 %v1021, %v1006
        %v1026 = vmax.f32 %v1022, %v1011
        %v1027 = vmax.f32 %v1023, %v1024
        %v1028 = vmax.f32 %v1025, %v1026
        %v1029 = vmax.f32 %v1027, %v1028
        %v1030 = vrot.slane %v1029, 4
        %v1031 = vmax.f32 %v1029, %v1030
        %v1032 = vrot.slane %v1031, 2
        %v1033 = vmax.f32 %v1031, %v1032
        %v1034 = vrot.slane %v1033, 1
        %v1035 = vmax.f32 %v1033, %v1034
        %v1036 = vmax.f32 %v1014, %v1035
        %v1038 = vlaneseq
        %v1039 = vshrl.u32 %v1038, 7
        %v1040 = vsub.s32 0, %v1039
        %v1041 = vrot.slane %v1036, %v1040
        %v1043 = vsub.f32 %v936, %v1041
        %v1044 = vsub.f32 %v941, %v1041
        %v1045 = vsub.f32 %v946, %v1041
        %v1046 = vsub.f32 %v951, %v1041
        %v1047 = vsub.f32 %v956, %v1041
        %v1048 = vsub.f32 %v961, %v1041
        %v1049 = vsub.f32 %v966, %v1041
        %v1050 = vsub.f32 %v971, %v1041
        %v1051 = vsub.f32 %v976, %v1041
        %v1052 = vsub.f32 %v981, %v1041
        %v1053 = vsub.f32 %v986, %v1041
        %v1054 = vsub.f32 %v991, %v1041
        %v1055 = vsub.f32 %v996, %v1041
        %v1056 = vsub.f32 %v1001, %v1041
        %v1057 = vsub.f32 %v1006, %v1041
        %v1058 = vsub.f32 %v1011, %v1041
        %v1059 = vmul.f32 %v1043, 1.442695
        %v1060 = vpow.pop %v1059
        %v1061 = vmul.f32 %v1044, 1.442695
        %v1062 = vpow.pop %v1061
        %v1063 = vmul.f32 %v1045, 1.442695
        %v1064 = vpow.pop %v1063
        %v1065 = vmul.f32 %v1046, 1.442695
        %v1066 = vpow.pop %v1065
        %v1067 = vmul.f32 %v1047, 1.442695
        %v1068 = vpow.pop %v1067
        %v1069 = vmul.f32 %v1048, 1.442695
        %v1070 = vpow.pop %v1069
        %v1071 = vmul.f32 %v1049, 1.442695
        %v1072 = vpow.pop %v1071
        %v1073 = vmul.f32 %v1050, 1.442695
        %v1074 = vpow.pop %v1073
        %v1075 = vmul.f32 %v1051, 1.442695
        %v1076 = vpow.pop %v1075
        %v1077 = vmul.f32 %v1052, 1.442695
        %v1078 = vpow.pop %v1077
        %v1079 = vmul.f32 %v1053, 1.442695
        %v1080 = vpow.pop %v1079
        %v1081 = vmul.f32 %v1054, 1.442695
        %v1082 = vpow.pop %v1081
        %v1083 = vmul.f32 %v1055, 1.442695
        %v1084 = vpow.pop %v1083
        %v1085 = vmul.f32 %v1056, 1.442695
        %v1086 = vpow.pop %v1085
        %v1087 = vmul.f32 %v1057, 1.442695
        %v1088 = vpow.pop %v1087
        %v1089 = vmul.f32 %v1058, 1.442695
        %v1090 = vpow.pop %v1089
        %v1091 = vsub.f32 %v1014, %v1036
        %v1092 = vmul.f32 %v1091, 1.442695
        %v1093 = vpow.pop %v1092
        %v1094 = vld [vmem:[#allocation5] sm:$0x1]
        %v1095 = vmul.f32 %v1093, %v1094
        %v1096 = vadd.f32 %v1060, %v1062
        %v1097 = vadd.f32 %v1096, %v1064
        %v1098 = vadd.f32 %v1097, %v1066
        %v1099 = vadd.f32 %v1098, %v1068
        %v1100 = vadd.f32 %v1099, %v1070
        %v1101 = vadd.f32 %v1100, %v1072
        %v1102 = vadd.f32 %v1101, %v1074
        %v1103 = vadd.f32 %v1102, %v1076
        %v1104 = vadd.f32 %v1103, %v1078
        %v1105 = vadd.f32 %v1104, %v1080
        %v1106 = vadd.f32 %v1105, %v1082
        %v1107 = vadd.f32 %v1106, %v1084
        %v1108 = vadd.f32 %v1107, %v1086
        %v1109 = vadd.f32 %v1108, %v1088
        %v1110 = vadd.f32 %v1109, %v1090
        %v1111 = vrot.slane %v1110, 4
        %v1112 = vadd.f32 %v1110, %v1111
        %v1113 = vrot.slane %v1112, 2
        %v1114 = vadd.f32 %v1112, %v1113
        %v1115 = vrot.slane %v1114, 1
        %v1116 = vadd.f32 %v1114, %v1115
        %v1117 = vadd.f32 %v1095, %v1116
        %1118 = vst [vmem:[#allocation5] sm:$0x1] %v1117
        %1119 = vmatprep.subr.mxu0 0.0
        %1120 = vmatpush1.msra.mxu0 %v1060
        %1121 = vmatprep.subr.mxu0 0.0
        %1122 = vmatpush1.msra.mxu0 %v1062
        %1123 = vmatprep.subr.mxu0 0.0
        %1124 = vmatpush1.msra.mxu0 %v1064
        %1125 = vmatprep.subr.mxu0 0.0
        %1126 = vmatpush1.msra.mxu0 %v1066
        %1127 = vmatprep.subr.mxu0 0.0
        %1128 = vmatpush1.msra.mxu0 %v1068
        %1129 = vmatprep.subr.mxu0 0.0
        %1130 = vmatpush1.msra.mxu0 %v1070
        %1131 = vmatprep.subr.mxu0 0.0
        %1132 = vmatpush1.msra.mxu0 %v1072
        %1133 = vmatprep.subr.mxu0 0.0
        %1134 = vmatpush1.msra.mxu0 %v1074
        %1135 = vmatprep.subr.mxu0 0.0
        %1136 = vmatpush1.msra.mxu0 %v1076
        %1137 = vmatprep.subr.mxu0 0.0
        %1138 = vmatpush1.msra.mxu0 %v1078
        %1139 = vmatprep.subr.mxu0 0.0
        %1140 = vmatpush1.msra.mxu0 %v1080
        %1141 = vmatprep.subr.mxu0 0.0
        %1142 = vmatpush1.msra.mxu0 %v1082
        %1143 = vmatprep.subr.mxu0 0.0
        %1144 = vmatpush1.msra.mxu0 %v1084
        %1145 = vmatprep.subr.mxu0 0.0
        %1146 = vmatpush1.msra.mxu0 %v1086
        %1147 = vmatprep.subr.mxu0 0.0
        %1148 = vmatpush1.msra.mxu0 %v1088
        %1149 = vmatprep.subr.mxu0 0.0
        %1150 = vmatpush1.msra.mxu0 %v1090
        %1151 = vmatprep.subr.mxu0 0.0
        %1152 = vmatpush1.msra.mxu0 0.0
        %1153 = vmatprep.subr.mxu0 0.0
        %1154 = vmatpush1.msra.mxu0 0.0
        %1155 = vmatprep.subr.mxu0 0.0
        %1156 = vmatpush1.msra.mxu0 0.0
        %1157 = vmatprep.subr.mxu0 0.0
        %1158 = vmatpush1.msra.mxu0 0.0
        %1159 = vmatprep.subr.mxu0 0.0
        %1160 = vmatpush1.msra.mxu0 0.0
        %1161 = vmatprep.subr.mxu0 0.0
        %1162 = vmatpush1.msra.mxu0 0.0
        %1163 = vmatprep.subr.mxu0 0.0
        %1164 = vmatpush1.msra.mxu0 0.0
        %1165 = vmatprep.subr.mxu0 0.0
        %1166 = vmatpush1.msra.mxu0 0.0
        %1167 = vmatprep.subr.mxu0 0.0
        %1168 = vmatpush1.msra.mxu0 0.0
        %1169 = vmatprep.subr.mxu0 0.0
        %1170 = vmatpush1.msra.mxu0 0.0
        %1171 = vmatprep.subr.mxu0 0.0
        %1172 = vmatpush1.msra.mxu0 0.0
        %1173 = vmatprep.subr.mxu0 0.0
        %1174 = vmatpush1.msra.mxu0 0.0
        %1175 = vmatprep.subr.mxu0 0.0
        %1176 = vmatpush1.msra.mxu0 0.0
        %1177 = vmatprep.subr.mxu0 0.0
        %1178 = vmatpush1.msra.mxu0 0.0
        %1179 = vmatprep.subr.mxu0 0.0
        %1180 = vmatpush1.msra.mxu0 0.0
        %1181 = vmatprep.subr.mxu0 0.0
        %1182 = vmatpush1.msra.mxu0 0.0
        %1183 = vmatprep.mubr.f32.mxu0 0.0
        %1184 = vmatmul.mubr.f32.gmra.mrb[0].mxu0 %v786
        %v1185 = vpop.f32.mrb[0].mxu0
        %v1186 = vadd.f32 0.0, %v1185
        %v1187 = vpop.f32.mrb[0].mxu0
        %1188 = vdwg.mxu0
        %v1189 = vld [vmem:[#allocation6] sm:$0xff]
        %v1191 = vlaneseq
        %v1192 = vshrl.u32 %v1191, 7
        %v1193 = vsub.s32 0, %v1192
        %v1194 = vrot.slane %v1093, %v1193
        %v1196 = vmul.f32 %v1194, %v1189
        %v1197 = vadd.f32 %v1196, %v1186
        %1198 = vst [vmem:[#allocation6] sm:$0xff] %v1197
        %1199 = vst [vmem:[#allocation4] sm:$0x1] %v1036
        %p1200 = scmp.eq.s32.totalorder %s31, 3
        // Predicated region
        $region65: #{main_block_forward.1} parent=55 // pred_check
          %p1201 = pneg %p1200
        $region66: #{main_block_forward.1} parent=55 // pred_check_branch
          %1203 = sbr.rel (%p1201) target = $region68
        $region67: #{main_block_forward.1} parent=55 // pred_region
          %v1204 = vld [vmem:[#allocation5] sm:$0x1]
          %v1205 = vrcp.pop %v1204
          %v1206 = vmul.f32 1.0, %v1205
          %s1207 = sld [smem:[#allocation9]]
          %v1208 = vld [vmem:[#allocation6] sm:$0xff]
          %v1210 = vlaneseq
          %v1211 = vshrl.u32 %v1210, 7
          %v1212 = vsub.s32 0, %v1211
          %v1213 = vrot.slane %v1206, %v1212
          %v1215 = vmul.f32 %v1208, %v1213
          %v1216 = vstv %s1207
          %v1217 = vmul.f32 %v1216, %v1215
          %v1218 = vld [vmem:[#allocation2] sm:$0xff]
          %v1219 = vadd.f32 %v1217, %v1218
          %1220 = vst [vmem:[%s388] sm:$0xff] %v1219
        $region68: #{main_block_forward.1} parent=55 // pred_fallthru
          _
        %s1221 = sand.u32 %s260, 1
        %s1222 = scalar_lea.sflag [#allocation11], %s1221
        %s1223 = sand.u32 %s260, 1
        %s1224 = smul.addr %s1223, 8
        %s1225 = scalar_lea.vmem [#allocation10], %s1224
        // Predicated region
        $region69: #{main_block_forward.1} parent=55 // pred_check
          %p1226 = pneg %p270
        $region70: #{main_block_forward.1} parent=55 // pred_check_branch
          %1228 = sbr.rel (%p1226) target = $region72
        $region71: #{main_block_forward.1} parent=55 // pred_region
          %s1230 = ssub.s32 128, 128
          %1231 = vsyncadd %s1222, %s1230
          %s1232 = smul.addr %s29, 4
          %s1233 = sadd.s32 %s30, %s1232
          %s1234 = smul.addr %s1233, 128
          %s1235 = scalar_lea.hbm %s9, %s1234
          %s1237 = sshll.u32 %s1225, 4
          %s1238 = int_to_ptr.vmem [resolvable:$true] %s1237
          %1240 = dma.vmem_to_hbm [thread:$0]  %s1238, 128, %s1235, %s1222
        $region72: #{main_block_forward.1} parent=55 // pred_fallthru
          _
      $region56: #{main_block_forward.1} parent=5 // pred_fallthru
        _
      %p1241 = scmp.le.s32.totalorder 2, %s19
      // Predicated region
      $region73: #{main_block_forward.1} parent=5 // pred_check
        %p1242 = pneg %p1241
      $region74: #{main_block_forward.1} parent=5 // pred_check_branch
        %1244 = sbr.rel (%p1242) target = $region76
      $region75: #{main_block_forward.1} parent=5 // pred_region
        %s1245 = ssub.s32 %s19, 2
        // Predicated region
        $region77: #{main_block_forward.1} parent=75 // pred_check
          %p1246 = pneg %p276
        $region78: #{main_block_forward.1} parent=75 // pred_check_branch
          %1248 = sbr.rel (%p1246) target = $region80
        $region79: #{main_block_forward.1} parent=75 // pred_region
          %s1249 = sand.u32 %s261, 1
          %s1250 = scalar_lea.sflag [#allocation11], %s1249
          %s1251 = sand.u32 %s261, 1
          %s1252 = smul.addr %s1251, 8
          %s1253 = scalar_lea.vmem [#allocation10], %s1252
          %1254 = dma.done %s1250, 128
        $region80: #{main_block_forward.1} parent=75 // pred_fallthru
          _
      $region76: #{main_block_forward.1} parent=5 // pred_fallthru
        _
    $region6: #{main_block_forward.1} parent=1 // loop_footer
      %s23 = sadd.s32 1, %s19
    $region7: #{main_block_forward.1} parent=1 // loop_footer_branch
      %18 = sbr.rel target = $region3
    $region8: #{main_block_forward.1} parent=1 // loop_exit
      _
    %1255 = vsyncpa [#allocation11], 1
    %s1256 = scalar_lea.sflag [#allocation11], 1
    %1257 = vsyncpa %s1256, 1

</llo_original>
